<compile_context>
chip_gen: v5e
topology: v5e:2x2
jax: 0.10.0
libtpu: 0.0.40
codegen_flags: <defaults>
</compile_context>

<pallas_src>
import jax
import jax.numpy as jnp
from jax import lax
from jax.scipy.linalg import cho_solve
from jax.experimental import pallas as pl
from jax.experimental.pallas import tpu as pltpu

# Model hyper-parameters: ResOptNet1(nHidden=128, bn=False, nineq=200, dataset='mnist')
N_FEATURES = 28 * 28
N_HIDDEN = 128
N_CLS = 10
N_INEQ = 200
EPS = 1e-4
LANE = 128                       # TPU lane width; nCls padded to this inside the kernels
MXU_DTYPE = jnp.bfloat16         # fc1 MXU operand dtype (accumulation is always f32)
HIGHEST = lax.Precision.HIGHEST  # used only by the pure-JAX references


def _round_up(n, m):
    return ((n + m - 1) // m) * m


def _choose_batch_tile(B):
    """Pick (bm, B_pad): batch tile and padded batch so bm | B_pad and bm <= 1024."""
    Bp = _round_up(B, 8)
    if Bp <= 1024:
        return Bp, Bp                      # single full-batch block (block dim == array dim)
    bm = 1024 if Bp >= 2048 else 512       # >= 2 "parallel" steps for large B (v7x megacore)
    return bm, _round_up(Bp, bm)


# ---------------------------------------------------------------------------
# Pallas kernel 1: fused  relu(fc2(relu(fc1(x))))  with lane-padded fc2 output
# ---------------------------------------------------------------------------
def _fused_mlp_kernel(x_ref, w1_ref, b1_ref, w2_ref, b2_ref, z_ref):
    # fc1 on the MXU: bf16 operands (pre-cast outside the kernel), f32 accumulation.
    h = jnp.dot(x_ref[...], w1_ref[...], preferred_element_type=jnp.float32)
    h = jnp.maximum(h + b1_ref[...], 0.0)                        # ReLU(fc1), f32 VPU math
    # fc2 stays f32 (small; keeps the rounding the downstream QP amplifies bounded).
    z = jnp.dot(h, w2_ref[...], preferred_element_type=jnp.float32)
    z = jnp.maximum(z + b2_ref[...], 0.0)                        # ReLU(fc2); padded cols stay 0
    z_ref[...] = z


def pallas_fused_mlp(xf_pad, w1t, b1, w2p, b2p, bm):
    """xf_pad: [B_pad, 784] (MXU dtype); w1t: [784, H]; w2p: [H, 128] -> [B_pad, 128] f32."""
    Bp, K = xf_pad.shape
    H = w1t.shape[1]
    Np = w2p.shape[1]
    grid = (Bp // bm,)
    return pl.pallas_call(
        _fused_mlp_kernel,
        out_shape=jax.ShapeDtypeStruct((Bp, Np), jnp.float32),
        grid=grid,
        in_specs=[
            pl.BlockSpec((bm, K), lambda i: (i, 0)),
            pl.BlockSpec((K, H), lambda i: (0, 0)),
            pl.BlockSpec((1, H), lambda i: (0, 0)),
            pl.BlockSpec((H, Np), lambda i: (0, 0)),
            pl.BlockSpec((1, Np), lambda i: (0, 0)),
        ],
        out_specs=pl.BlockSpec((bm, Np), lambda i: (i, 0)),
        compiler_params=pltpu.CompilerParams(
            dimension_semantics=("parallel",),
            vmem_limit_bytes=32 * 1024 * 1024,
        ),
    )(xf_pad, w1t, b1, w2p, b2p)


# ---------------------------------------------------------------------------
# Pallas kernel 2: lane-dense residual add + masked log_softmax epilogue
# ---------------------------------------------------------------------------
def _residual_logsoftmax_kernel(zq_ref, z_ref, o_ref):
    y = zq_ref[...] + z_ref[...]
    col = lax.broadcasted_iota(jnp.int32, y.shape, 1)
    y = jnp.where(col < N_CLS, y, -jnp.inf)                      # mask padded lanes
    m = jnp.max(y, axis=-1, keepdims=True)
    e = jnp.exp(y - m)                                           # exp(-inf) = 0 on padded lanes
    lse = m + jnp.log(jnp.sum(e, axis=-1, keepdims=True))
    o_ref[...] = y - lse


def pallas_residual_logsoftmax(zq_pad, z_pad, bm):
    """zq_pad, z_pad: [B_pad, 128] f32 -> [B_pad, 128] f32 (valid lanes: [:, :N_CLS])."""
    Bp, C = z_pad.shape
    grid = (Bp // bm,)
    return pl.pallas_call(
        _residual_logsoftmax_kernel,
        out_shape=jax.ShapeDtypeStruct((Bp, C), jnp.float32),
        grid=grid,
        in_specs=[pl.BlockSpec((bm, C), lambda i: (i, 0)),
                  pl.BlockSpec((bm, C), lambda i: (i, 0))],
        out_specs=pl.BlockSpec((bm, C), lambda i: (i, 0)),
        compiler_params=pltpu.CompilerParams(
            dimension_semantics=("parallel",),
            vmem_limit_bytes=32 * 1024 * 1024,
        ),
    )(zq_pad, z_pad)


# ---------------------------------------------------------------------------
# QP layer: batched  min_z 0.5 z'Qz + p'z  s.t.  Gz <= h   (fixed-iteration PDIPM)
# ---------------------------------------------------------------------------
def qp_solve_batch(Q, p_batch, G, h, n_iter=30, sigma=0.1):
    """Q: [n,n] SPD (shared); G: [m,n]; h: [m]; p_batch: [B,n].  Returns (z, lam)."""
    n = Q.shape[0]
    m = G.shape[0]
    GT = G.T

    def solve_one(p):
        def body(_, carry):
            z, s, lam = carry
            s_safe = jnp.maximum(s, 1e-9)
            mu = jnp.dot(lam, s) / m
            r_dual = Q @ z + p + GT @ lam
            r_prim = G @ z + s - h
            r_cent = lam * s - sigma * mu
            d = lam / s_safe
            Hmat = Q + (GT * d) @ G                       # Q + G' diag(lam/s) G  (SPD)
            # Tiny diagonal-proportional jitter: keeps the f32 Cholesky from breaking
            # down when barrier terms make Hmat extremely stiff (late iterations).
            Hmat = Hmat + 1e-5 * jnp.diag(jnp.diagonal(Hmat))
            rhs = -(r_dual + GT @ ((lam * r_prim - r_cent) / s_safe))
            chol = jnp.linalg.cholesky(Hmat)
            dz = cho_solve((chol, True), rhs)
            ds = -r_prim - G @ dz
            dlam = -(r_cent + lam * ds) / s_safe
            a_s = jnp.min(jnp.where(ds < 0, -s / jnp.minimum(ds, -1e-12), jnp.inf))
            a_l = jnp.min(jnp.where(dlam < 0, -lam / jnp.minimum(dlam, -1e-12), jnp.inf))
            alpha = jnp.minimum(1.0, 0.99 * jnp.minimum(a_s, a_l))
            return z + alpha * dz, s + alpha * ds, lam + alpha * dlam

        z_init = jnp.zeros((n,), jnp.float32)
        s_init = jnp.maximum(h - G @ z_init, 0.1)
        lam_init = jnp.ones((m,), jnp.float32)
        z, s, lam = lax.fori_loop(0, n_iter, body, (z_init, s_init, lam_init))
        return z, lam

    return jax.vmap(solve_one)(p_batch)


# ---------------------------------------------------------------------------
# Parameters
# ---------------------------------------------------------------------------
def init_params(key):
    ks = jax.random.split(key, 6)

    def u(k, shape, bound):
        return jax.random.uniform(k, shape, jnp.float32, -bound, bound)

    bound1 = 1.0 / jnp.sqrt(jnp.float32(N_FEATURES))
    bound2 = 1.0 / jnp.sqrt(jnp.float32(N_HIDDEN))
    tril_mask = jnp.tril(jnp.ones((N_CLS, N_CLS), jnp.float32))
    # torch init is tril(rand); the extra 0.5*I is a deliberate init choice that
    # keeps Q = LL' + eps*I well-conditioned for the f32 demo.
    L = jnp.tril(jax.random.uniform(ks[4], (N_CLS, N_CLS), jnp.float32)) \
        + 0.5 * jnp.eye(N_CLS, dtype=jnp.float32)
    return {
        "fc1_w": u(ks[0], (N_HIDDEN, N_FEATURES), bound1),   # PyTorch layout [out, in]
        "fc1_b": u(ks[1], (N_HIDDEN,), bound1),
        "fc2_w": u(ks[2], (N_CLS, N_HIDDEN), bound2),
        "fc2_b": u(ks[3], (N_CLS,), bound2),
        "M": tril_mask,
        "L": L,
        "G": jax.random.uniform(ks[5], (N_INEQ, N_CLS), jnp.float32, -1.0, 1.0),
        "z0": jnp.zeros((N_CLS,), jnp.float32),
        "s0": jnp.ones((N_INEQ,), jnp.float32),
    }


def prepare_params(params):
    """Hoist all layout work (transpose / lane padding / MXU-dtype cast) out of the forward."""
    w1t = params["fc1_w"].T.astype(MXU_DTYPE)                    # [784, H], MXU dtype
    b1 = params["fc1_b"].reshape(1, N_HIDDEN).astype(jnp.float32)
    w2p = jnp.zeros((N_HIDDEN, LANE), jnp.float32).at[:, :N_CLS].set(params["fc2_w"].T)
    b2p = jnp.zeros((1, LANE), jnp.float32).at[0, :N_CLS].set(params["fc2_b"])
    return {"w1t": w1t, "b1": b1, "w2p": w2p, "b2p": b2p,
            "M": params["M"], "L": params["L"], "G": params["G"],
            "z0": params["z0"], "s0": params["s0"]}


# ---------------------------------------------------------------------------
# Forward pass (Pallas path)
# ---------------------------------------------------------------------------
def resoptnet1_forward(prep, x):
    B = x.shape[0]
    bm, B_pad = _choose_batch_tile(B)

    xf = x.reshape(B, -1).astype(MXU_DTYPE)                      # bf16: halves dominant HBM read
    if B_pad != B:
        xf = jnp.pad(xf, ((0, B_pad - B), (0, 0)))

    # Fused fc1+ReLU+fc2+ReLU; output is 128-lane padded f32.
    z_pad = pallas_fused_mlp(xf, prep["w1t"], prep["b1"], prep["w2p"], prep["b2p"], bm)
    z = z_pad[:B, :N_CLS]                                        # "inputs" in the torch code

    # Parameter-only QP data (independent of x; tiny 10x10 / 200-vector math).
    L = prep["M"] * prep["L"]
    Q = L @ L.T + EPS * jnp.eye(N_CLS, dtype=jnp.float32)
    h = prep["z0"] @ prep["G"].T + prep["s0"]

    zq, _ = qp_solve_batch(Q, z, prep["G"], h)                   # QPFunction(Q, z, G, h)

    # Lane-dense, batch-tiled residual + log_softmax epilogue; slice once at the end.
    zq_pad = jnp.zeros((B_pad, LANE), jnp.float32).at[:B, :N_CLS].set(zq)
    out_pad = pallas_residual_logsoftmax(zq_pad, z_pad, bm)
    return out_pad[:B, :N_CLS]


# ---------------------------------------------------------------------------
# Pure-JAX references (validate the Pallas kernels)
# ---------------------------------------------------------------------------
def _mlp_reference(params, xf, mxu_dtype):
    x_c = xf.astype(mxu_dtype).astype(jnp.float32)
    w1_c = params["fc1_w"].astype(mxu_dtype).astype(jnp.float32)
    hdn = jax.nn.relu(jnp.dot(x_c, w1_c.T, precision=HIGHEST) + params["fc1_b"])
    return jax.nn.relu(jnp.dot(hdn, params["fc2_w"].T, precision=HIGHEST) + params["fc2_b"])


def _reference_forward(params, x, mxu_dtype):
    B = x.shape[0]
    xf = x.reshape(B, -1).astype(jnp.float32)
    z = _mlp_reference(params, xf, mxu_dtype)
    L = params["M"] * params["L"]
    Q = L @ L.T + EPS * jnp.eye(N_CLS, dtype=jnp.float32)
    h = params["z0"] @ params["G"].T + params["s0"]
    zq, _ = qp_solve_batch(Q, z, params["G"], h)
    return jax.nn.log_softmax(zq + z, axis=-1)


if __name__ == "__main__":
    key = jax.random.PRNGKey(0)
    pkey, xkey = jax.random.split(key)
    params = init_params(pkey)
    prep = prepare_params(params)
    x = jax.random.normal(xkey, (2, 1, 28, 28), jnp.float32)

    fwd = jax.jit(resoptnet1_forward)
    out = jax.block_until_ready(fwd(prep, x))
    assert out.shape == (2, N_CLS), out.shape
    assert bool(jnp.all(jnp.isfinite(out)))
    # A valid log_softmax row exponentiates to a probability vector.
    assert bool(jnp.allclose(jnp.sum(jnp.exp(out), axis=-1), 1.0, atol=1e-3))

    # Tight check against a compute-dtype-matched reference (validates the kernels).
    ref_matched = _reference_forward(params, x, MXU_DTYPE)
    err_matched = float(jnp.max(jnp.abs(out - ref_matched)))
    assert err_matched < 5e-3, f"matched-dtype reference mismatch {err_matched}"

    # Gross sanity bound vs. the all-f32 reference (bf16 fc1 rounding is amplified by
    # the QP's sensitivity; this only guards against wildly wrong outputs).
    ref_f32 = _reference_forward(params, x, jnp.float32)
    err_f32 = float(jnp.max(jnp.abs(out - ref_f32)))
    assert err_f32 < 1.0, f"f32 reference sanity deviation {err_f32}"

    # KKT sanity check of the QP layer (fidelity to qpth's exact solve).
    xf = x.reshape(x.shape[0], -1).astype(jnp.float32)
    z_lin = _mlp_reference(params, xf, jnp.float32)
    Lm = params["M"] * params["L"]
    Q = Lm @ Lm.T + EPS * jnp.eye(N_CLS, dtype=jnp.float32)
    h = params["z0"] @ params["G"].T + params["s0"]
    zq, lam = qp_solve_batch(Q, z_lin, params["G"], h)
    feas = float(jnp.max(zq @ params["G"].T - h[None, :]))
    stat = float(jnp.max(jnp.abs(zq @ Q + z_lin + lam @ params["G"])))
    assert feas <= 1e-2, f"QP primal infeasibility {feas}"
    assert stat <= 5e-2, f"QP stationarity residual {stat}"

    print("KERNEL_OK")
</pallas_src>

<mosaic_0001>
module attributes {stable_mosaic.version = 11 : i64} {
  func.func @_fused_mlp_kernel(%arg0: i32, %arg1: memref<8x784xbf16, #tpu.memory_space<vmem>>, %arg2: memref<784x128xbf16, #tpu.memory_space<vmem>>, %arg3: memref<1x128xf32, #tpu.memory_space<vmem>>, %arg4: memref<128x128xf32, #tpu.memory_space<vmem>>, %arg5: memref<1x128xf32, #tpu.memory_space<vmem>>, %arg6: memref<8x128xf32, #tpu.memory_space<vmem>>) attributes {dimension_semantics = [#tpu.dimension_semantics<parallel>], iteration_bounds = array<i64: 1>, scalar_prefetch = 0 : i64, scratch_operands = 0 : i64, tpu.core_type = #tpu.core_type<tc>, window_params = [{transform_indices = @transform_0, window_bounds = array<i64: 8, 784>}, {pipeline_mode = #tpu.pipeline_mode<synchronous>, transform_indices = @transform_1, window_bounds = array<i64: 784, 128>}, {pipeline_mode = #tpu.pipeline_mode<synchronous>, transform_indices = @transform_2, window_bounds = array<i64: 1, 128>}, {pipeline_mode = #tpu.pipeline_mode<synchronous>, transform_indices = @transform_3, window_bounds = array<i64: 128, 128>}, {pipeline_mode = #tpu.pipeline_mode<synchronous>, transform_indices = @transform_4, window_bounds = array<i64: 1, 128>}, {transform_indices = @transform_5, window_bounds = array<i64: 8, 128>}]} {
    %c0 = arith.constant 0 : index
    %c0_0 = arith.constant 0 : index
    %0 = vector.load %arg1[%c0, %c0_0] : memref<8x784xbf16, #tpu.memory_space<vmem>>, vector<8x784xbf16>
    %c0_1 = arith.constant 0 : index
    %c0_2 = arith.constant 0 : index
    %1 = vector.load %arg2[%c0_1, %c0_2] : memref<784x128xbf16, #tpu.memory_space<vmem>>, vector<784x128xbf16>
    %cst = arith.constant dense<0.000000e+00> : vector<8x128xf32>
    %2 = tpu.matmul %0, %1, %cst {dimension_numbers = #tpu.dot_dimension_numbers<[1], [0], [0], [1], [0, 0, 1, 1], [], []>} : vector<8x784xbf16>, vector<784x128xbf16>, vector<8x128xf32> -> vector<8x128xf32>
    %c0_3 = arith.constant 0 : index
    %c0_4 = arith.constant 0 : index
    %3 = vector.load %arg3[%c0_3, %c0_4] : memref<1x128xf32, #tpu.memory_space<vmem>>, vector<1x128xf32>
    %4 = vector.broadcast %3 : vector<1x128xf32> to vector<8x128xf32>
    %5 = arith.addf %2, %4 : vector<8x128xf32>
    %cst_5 = arith.constant 0.000000e+00 : f32
    %6 = vector.broadcast %cst_5 : f32 to vector<8x128xf32>
    %7 = arith.maximumf %5, %6 : vector<8x128xf32>
    %c0_6 = arith.constant 0 : index
    %c0_7 = arith.constant 0 : index
    %8 = vector.load %arg4[%c0_6, %c0_7] : memref<128x128xf32, #tpu.memory_space<vmem>>, vector<128x128xf32>
    %cst_8 = arith.constant dense<0.000000e+00> : vector<8x128xf32>
    %9 = tpu.matmul %7, %8, %cst_8 {dimension_numbers = #tpu.dot_dimension_numbers<[1], [0], [0], [1], [0, 0, 1, 1], [], []>} : vector<8x128xf32>, vector<128x128xf32>, vector<8x128xf32> -> vector<8x128xf32>
    %c0_9 = arith.constant 0 : index
    %c0_10 = arith.constant 0 : index
    %10 = vector.load %arg5[%c0_9, %c0_10] : memref<1x128xf32, #tpu.memory_space<vmem>>, vector<1x128xf32>
    %11 = vector.broadcast %10 : vector<1x128xf32> to vector<8x128xf32>
    %12 = arith.addf %9, %11 : vector<8x128xf32>
    %cst_11 = arith.constant 0.000000e+00 : f32
    %13 = vector.broadcast %cst_11 : f32 to vector<8x128xf32>
    %14 = arith.maximumf %12, %13 : vector<8x128xf32>
    %c0_12 = arith.constant 0 : index
    %c0_13 = arith.constant 0 : index
    %15 = vector.load %arg6[%c0_12, %c0_13] : memref<8x128xf32, #tpu.memory_space<vmem>>, vector<8x128xf32>
    tpu.vector_store %arg6[%c0_12, %c0_13], %14 {strides = array<i32>} : memref<8x128xf32, #tpu.memory_space<vmem>>, vector<8x128xf32>,
    return
  }
  func.func @transform_0(%arg0: i32) -> (i32, i32) {
    %c0_i32 = arith.constant 0 : i32
    %c0_i32_0 = arith.constant 0 : i32
    return %arg0, %c0_i32 : i32, i32
  }
  func.func @transform_1(%arg0: i32) -> (i32, i32) {
    %c0_i32 = arith.constant 0 : i32
    %c0_i32_0 = arith.constant 0 : i32
    %c0_i32_1 = arith.constant 0 : i32
    return %c0_i32, %c0_i32_0 : i32, i32
  }
  func.func @transform_2(%arg0: i32) -> (i32, i32) {
    %c0_i32 = arith.constant 0 : i32
    %c0_i32_0 = arith.constant 0 : i32
    %c0_i32_1 = arith.constant 0 : i32
    return %c0_i32, %c0_i32_0 : i32, i32
  }
  func.func @transform_3(%arg0: i32) -> (i32, i32) {
    %c0_i32 = arith.constant 0 : i32
    %c0_i32_0 = arith.constant 0 : i32
    %c0_i32_1 = arith.constant 0 : i32
    return %c0_i32, %c0_i32_0 : i32, i32
  }
  func.func @transform_4(%arg0: i32) -> (i32, i32) {
    %c0_i32 = arith.constant 0 : i32
    %c0_i32_0 = arith.constant 0 : i32
    %c0_i32_1 = arith.constant 0 : i32
    return %c0_i32, %c0_i32_0 : i32, i32
  }
  func.func @transform_5(%arg0: i32) -> (i32, i32) {
    %c0_i32 = arith.constant 0 : i32
    %c0_i32_0 = arith.constant 0 : i32
    return %arg0, %c0_i32 : i32, i32
  }
}

module attributes {stable_mosaic.version = 11 : i64} {
  func.func @_residual_logsoftmax_kernel(%arg0: i32, %arg1: memref<8x128xf32, #tpu.memory_space<vmem>>, %arg2: memref<8x128xf32, #tpu.memory_space<vmem>>, %arg3: memref<8x128xf32, #tpu.memory_space<vmem>>) attributes {dimension_semantics = [#tpu.dimension_semantics<parallel>], iteration_bounds = array<i64: 1>, scalar_prefetch = 0 : i64, scratch_operands = 0 : i64, tpu.core_type = #tpu.core_type<tc>, window_params = [{transform_indices = @transform_0, window_bounds = array<i64: 8, 128>}, {transform_indices = @transform_1, window_bounds = array<i64: 8, 128>}, {transform_indices = @transform_2, window_bounds = array<i64: 8, 128>}]} {
    %c0 = arith.constant 0 : index
    %c0_0 = arith.constant 0 : index
    %0 = vector.load %arg1[%c0, %c0_0] : memref<8x128xf32, #tpu.memory_space<vmem>>, vector<8x128xf32>
    %c0_1 = arith.constant 0 : index
    %c0_2 = arith.constant 0 : index
    %1 = vector.load %arg2[%c0_1, %c0_2] : memref<8x128xf32, #tpu.memory_space<vmem>>, vector<8x128xf32>
    %2 = arith.addf %0, %1 : vector<8x128xf32>
    %3 = tpu.iota {dimensions = array<i32: 1>} : vector<8x128xi32>
    %c10_i32 = arith.constant 10 : i32
    %4 = vector.broadcast %c10_i32 : i32 to vector<8x128xi32>
    %5 = arith.cmpi slt, %3, %4 : vector<8x128xi32>
    %cst = arith.constant 0xFF800000 : f32
    %6 = vector.broadcast %cst : f32 to vector<8x128xf32>
    %7 = arith.select %5, %2, %6 : vector<8x128xi1>, vector<8x128xf32>
    %cst_3 = arith.constant dense<0xFF800000> : vector<8xf32>
    %8 = vector.multi_reduction <maximumf>, %7, %cst_3 [1] : vector<8x128xf32> to vector<8xf32>
    %9 = vector.shape_cast %8 : vector<8xf32> to vector<8x1xf32>
    %10 = vector.broadcast %9 : vector<8x1xf32> to vector<8x128xf32>
    %11 = arith.subf %7, %10 : vector<8x128xf32>
    %12 = math.exp %11 : vector<8x128xf32>
    %cst_4 = arith.constant dense<0.000000e+00> : vector<8xf32>
    %13 = vector.multi_reduction <add>, %12, %cst_4 [1] : vector<8x128xf32> to vector<8xf32>
    %14 = vector.shape_cast %13 : vector<8xf32> to vector<8x1xf32>
    %15 = math.log %14 : vector<8x1xf32>
    %16 = arith.addf %9, %15 : vector<8x1xf32>
    %17 = vector.broadcast %16 : vector<8x1xf32> to vector<8x128xf32>
    %18 = arith.subf %7, %17 : vector<8x128xf32>
    %c0_5 = arith.constant 0 : index
    %c0_6 = arith.constant 0 : index
    %19 = vector.load %arg3[%c0_5, %c0_6] : memref<8x128xf32, #tpu.memory_space<vmem>>, vector<8x128xf32>
    tpu.vector_store %arg3[%c0_5, %c0_6], %18 {strides = array<i32>} : memref<8x128xf32, #tpu.memory_space<vmem>>, vector<8x128xf32>,
    return
  }
  func.func @transform_0(%arg0: i32) -> (i32, i32) {
    %c0_i32 = arith.constant 0 : i32
    %c0_i32_0 = arith.constant 0 : i32
    return %arg0, %c0_i32 : i32, i32
  }
  func.func @transform_1(%arg0: i32) -> (i32, i32) {
    %c0_i32 = arith.constant 0 : i32
    %c0_i32_0 = arith.constant 0 : i32
    return %arg0, %c0_i32 : i32, i32
  }
  func.func @transform_2(%arg0: i32) -> (i32, i32) {
    %c0_i32 = arith.constant 0 : i32
    %c0_i32_0 = arith.constant 0 : i32
    return %arg0, %c0_i32 : i32, i32
  }
}

</mosaic_0001>

<llo_original>
// kernel: custom-call.20
$region0: #{custom-call.20}
  %s0 = inlined_call_operand.vmem [shape: f32[2,10], index: 0, kind: output, shape index: {}]

// kernel: custom-call.21
$region0: #{custom-call.21}
  %s0 = inlined_call_operand.vmem [shape: f32[2,200], index: 0, kind: output, shape index: {}]

// kernel: custom-call.29
$region0: #{custom-call.29}
  %s0 = inlined_call_operand.vmem [shape: f32[2,10,10], index: 0, kind: input, shape index: {}]
  %s1 = inlined_call_operand.vmem [shape: f32[2,10,10], index: 1, kind: output, shape index: {}]
  $region1: #{custom-call.29} parent=0
    #allocation0 [shape = 'u8[16384]{0}', space=vmem, size = 0x4000, scoped, tag = 'operand span for operand 0']
    #allocation1 [shape = 'u8[16384]{0}', space=vmem, size = 0x4000, scoped, tag = 'operand span for operand 1']
    loop: start=0, step=1, limit=4
    $region2: #{custom-call.29} parent=1 // loop_pre_header
      _
    $region3: #{custom-call.29} parent=1 // loop_header
      %s3 = sphi 0, %s7
      %p4 = scmp.ge.s32.totalorder %s3, 4
      %s10 = sphi 0, %s29
      %s11 = sphi 0, %s25
      %s12 = sphi 0, %s21
      %s13 = sphi 0, %s10
      %s14 = sphi 0, %s11
      %s15 = sphi 0, %s12
      %s16 = sphi 0, %s13
      %s17 = sphi 0, %s14
      %s18 = sphi 0, %s15
    $region4: #{custom-call.29} parent=1 // loop_header_branch
      %6 = sbr.rel (%p4) target = $region8
    $region5: #{custom-call.29} parent=1 // loop_body
      %s8 = ssub.s32 %s3, 1
      %s9 = ssub.s32 %s3, 2
      %s19 = sadd.s32 1, %s12
      %p20 = scmp.ge.s32.totalorder %s19, 1
      %s21 = scalar_select %p20, 0, %s19
      %s22 = sadd.s32 1, %s11
      %s23 = scalar_select %p20, %s22, %s11
      %p24 = scmp.ge.s32.totalorder %s23, 1
      %s25 = scalar_select %p24, 0, %s23
      %s26 = sadd.s32 1, %s10
      %s27 = scalar_select %p24, %s26, %s10
      %p28 = scmp.ge.s32.totalorder %s27, 2
      %s29 = scalar_select %p28, 0, %s27
      %p30 = scmp.le.s32.totalorder 1, %s3
      %p31 = scmp.lt.s32.totalorder %s3, 3
      %p32 = pnand %p30, %p31
      %p33 = pneg %p32
      // Predicated region
      $region9: #{custom-call.29} parent=5 // pred_check
        _
      $region10: #{custom-call.29} parent=5 // pred_check_branch
        %35 = sbr.rel (%p32) target = $region12
      $region11: #{custom-call.29} parent=5 // pred_region
        %s36 = ssub.s32 %s3, 1
      $region12: #{custom-call.29} parent=5 // pred_fallthru
        _
      %p37 = scmp.lt.s32.totalorder %s3, 2
      // Predicated region
      $region13: #{custom-call.29} parent=5 // pred_check
        %p38 = pneg %p37
      $region14: #{custom-call.29} parent=5 // pred_check_branch
        %40 = sbr.rel (%p38) target = $region16
      $region15: #{custom-call.29} parent=5 // pred_region
        %s41 = sand.u32 %s3, 1
        %s42 = sand.u32 %s3, 1
        %s43 = smul.addr %s42, 16
        %s44 = scalar_lea.vmem [#allocation0], %s43
        %s45 = sadd.s32 %s12, %s11
        %s46 = smul.addr %s10, 2
        %s47 = sadd.s32 %s45, %s46
        %s48 = smul.addr %s47, 8
        %s49 = scalar_lea.vmem %s0, %s48
        // Predicated region
        $region17: #{custom-call.29} parent=15 // pred_check
          _
        $region18: #{custom-call.29} parent=15 // pred_check_branch
          %51 = sbr.rel (0) target = $region20
        $region19: #{custom-call.29} parent=15 // pred_region
          // Predicated region
          $region21: #{custom-call.29} parent=19 // pred_check
            _
          $region22: #{custom-call.29} parent=19 // pred_check_branch
            %53 = sbr.rel (0) target = $region24
          $region23: #{custom-call.29} parent=19 // pred_region
            // Predicated region
            $region36: #{custom-call.29} parent=23 // pred_check
              _
            $region37: #{custom-call.29} parent=23 // pred_check_branch
              %71 = sbr.rel (0) target = $region39
            $region38: #{custom-call.29} parent=23 // pred_region
              loop: start=0, step=1, limit=1
              $region40: #{custom-call.29} parent=38 // loop_pre_header
                _
              $region41: #{custom-call.29} parent=38 // loop_header
                %s73 = sphi 0, %s77
                %p74 = scmp.ge.s32.totalorder %s73, 1
                %s78 = sphi %s49, %s49
                %s79 = sphi %s44, %s44
              $region42: #{custom-call.29} parent=38 // loop_header_branch
                %76 = sbr.rel (%p74) target = $region46
              $region43: #{custom-call.29} parent=38 // loop_body
                %v80 = vld [vmem:[%s78] sm:$0xff]
                %81 = vst [vmem:[%s79] sm:$0xff] %v80
                %v82 = vld [vmem:[%s78 + $0x8] sm:$0xff]
                %83 = vst [vmem:[%s79 + $0x8] sm:$0xff] %v82
              $region44: #{custom-call.29} parent=38 // loop_footer
                %s77 = sadd.s32 1, %s73
              $region45: #{custom-call.29} parent=38 // loop_footer_branch
                %72 = sbr.rel target = $region41
              $region46: #{custom-call.29} parent=38 // loop_exit
                _
            $region39: #{custom-call.29} parent=23 // pred_fallthru
              _
            // Predicated region
            $region47: #{custom-call.29} parent=23 // pred_check
              _
            $region48: #{custom-call.29} parent=23 // pred_check_branch
              %85 = sbr.rel target = $region50
            $region49: #{custom-call.29} parent=23 // pred_region
              _
            $region50: #{custom-call.29} parent=23 // pred_fallthru
              _
          $region24: #{custom-call.29} parent=19 // pred_fallthru
            _
          // Predicated region
          $region25: #{custom-call.29} parent=19 // pred_check
            _
          $region26: #{custom-call.29} parent=19 // pred_check_branch
            %55 = sbr.rel target = $region28
          $region27: #{custom-call.29} parent=19 // pred_region
            %s57 = ssub.s32 256, 1
            loop: start=0, step=1, limit=1
            $region29: #{custom-call.29} parent=27 // loop_pre_header
              _
            $region30: #{custom-call.29} parent=27 // loop_header
              %s59 = sphi 0, %s63
              %p60 = scmp.ge.s32.totalorder %s59, 1
              %s64 = sphi %s49, %s49
              %s65 = sphi %s44, %s44
            $region31: #{custom-call.29} parent=27 // loop_header_branch
              %62 = sbr.rel (%p60) target = $region35
            $region32: #{custom-call.29} parent=27 // loop_body
              %v66 = vld [vmem:[%s64] sm:%s57]
              %67 = vst [vmem:[%s65] sm:%s57] %v66
              %v68 = vld [vmem:[%s64 + $0x8] sm:%s57]
              %69 = vst [vmem:[%s65 + $0x8] sm:%s57] %v68
            $region33: #{custom-call.29} parent=27 // loop_footer
              %s63 = sadd.s32 1, %s59
            $region34: #{custom-call.29} parent=27 // loop_footer_branch
              %58 = sbr.rel target = $region30
            $region35: #{custom-call.29} parent=27 // loop_exit
              _
          $region28: #{custom-call.29} parent=19 // pred_fallthru
            _
        $region20: #{custom-call.29} parent=15 // pred_fallthru
          _
        %86 = vnop
      $region16: #{custom-call.29} parent=5 // pred_fallthru
        _
      %p87 = scmp.le.s32.totalorder 1, %s3
      %p88 = scmp.lt.s32.totalorder %s3, 3
      %p89 = pnand %p87, %p88
      %p90 = pneg %p89
      // Predicated region
      $region51: #{custom-call.29} parent=5 // pred_check
        _
      $region52: #{custom-call.29} parent=5 // pred_check_branch
        %92 = sbr.rel (%p89) target = $region54
      $region53: #{custom-call.29} parent=5 // pred_region
        %s93 = ssub.s32 %s3, 1
        %s94 = sand.u32 %s8, 1
        %s95 = sand.u32 %s8, 1
        %s96 = smul.addr %s95, 16
        %s97 = scalar_lea.vmem [#allocation0], %s96
        %s98 = sand.u32 %s8, 1
        %s99 = sand.u32 %s8, 1
        %s100 = smul.addr %s99, 16
        %s101 = scalar_lea.vmem [#allocation0], %s100
        %s102 = sand.u32 %s8, 1
        %s103 = sand.u32 %s8, 1
        %s104 = smul.addr %s103, 16
        %s105 = scalar_lea.vmem [#allocation1], %s104
        %106 = vst [vmem:[%s105] sm:$0xff] 0.0
        %s107 = scalar_lea.vmem %s105, 8 [#allocation1]
        %108 = vst [vmem:[%s107] sm:$0xff] 0.0
        %vm109 = vcmask 7168
        %v110 = vld [vmem:[%s105] ss:$0 sm:$0xff]
        %v111 = vld [vmem:[%s97] ss:$0 sm:$0xff]
        %v112 = vmul.f32 %v110, %v110
        %113 = vadd.xlane.f32.xlu0 %v112
        %v114 = vpop.xlane.xlu0 %113
        %v115 = vsub.f32 %v111, %v114
        %v116 = vrsqrt.pop %v115
        %v117 = vmul.f32 %v116, %v115
        %v118 = vmul.f32 %v117, %v116
        %v119 = vmul.f32 0.5, %v118
        %v120 = vsub.f32 1.5, %v119
        %v121 = vmul.f32 %v116, %v120
        %vm122 = vweird.f32 %v115
        %vm123 = vweird.f32 %v116
        %vm124 = vmor %vm122, %vm123
        %v125 = vsel %vm124, %v116, %v121
        %v126 = vld [vmem:[%s97] sm:$0xff]
        %v127 = vld [vmem:[%s105] sm:$0xff]
        %v128 = vmul.f32 %v127, %v110
        %129 = vadd.xlane.f32.xlu0 %v128
        %v130 = vpop.xlane.xlu0 %129
        %v131 = vsub.f32 %v126, %v130
        %v132 = vmul.f32 %v131, %v125
        %v133 = vsel %vm109, %v132, 0.0
        %v134 = vadd.f32 %v127, %v133
        %135 = vst [vmem:[%s105] sm:$0xff] %v134
        %s136 = scalar_lea.vmem %s97, 8 [#allocation0]
        %v137 = vld [vmem:[%s136] sm:$0xff]
        %s138 = scalar_lea.vmem %s105, 8 [#allocation1]
        %v139 = vld [vmem:[%s138] sm:$0xff]
        %v140 = vmul.f32 %v139, %v110
        %141 = vadd.xlane.f32.xlu0 %v140
        %v142 = vpop.xlane.xlu0 %141
        %v143 = vsub.f32 %v137, %v142
        %v144 = vmul.f32 %v143, %v125
        %v145 = vsel %vm109, %v144, 0.0
        %v146 = vadd.f32 %v139, %v145
        %s147 = scalar_lea.vmem %s105, 8 [#allocation1]
        %148 = vst [vmem:[%s147] sm:$0xff] %v146
        %vm149 = vcmask 15368
        %s150 = scalar_lea.vmem %s105, 1 [#allocation1]
        %v151 = vld [vmem:[%s150] ss:$0 sm:$0xff]
        %s152 = scalar_lea.vmem %s97, 1 [#allocation0]
        %v153 = vld [vmem:[%s152] ss:$0 sm:$0xff]
        %v154 = vmul.f32 %v151, %v151
        %155 = vadd.xlane.f32.xlu0 %v154
        %v156 = vpop.xlane.xlu0 %155
        %v157 = vsub.f32 %v153, %v156
        %v158 = vrsqrt.pop %v157
        %v159 = vmul.f32 %v158, %v157
        %v160 = vmul.f32 %v159, %v158
        %v161 = vmul.f32 0.5, %v160
        %v162 = vsub.f32 1.5, %v161
        %v163 = vmul.f32 %v158, %v162
        %vm164 = vweird.f32 %v157
        %vm165 = vweird.f32 %v158
        %vm166 = vmor %vm164, %vm165
        %v167 = vsel %vm166, %v158, %v163
        %v168 = vld [vmem:[%s97] sm:$0xff]
        %v169 = vld [vmem:[%s105] sm:$0xff]
        %v170 = vmul.f32 %v169, %v151
        %171 = vadd.xlane.f32.xlu0 %v170
        %v172 = vpop.xlane.xlu0 %171
        %v173 = vsub.f32 %v168, %v172
        %v174 = vmul.f32 %v173, %v167
        %vm175 = vcmask 1047553
        %vm176 = vmand %vm149, %vm175
        %v177 = vsel %vm176, %v174, 0.0
        %v178 = vadd.f32 %v169, %v177
        %179 = vst [vmem:[%s105] sm:$0xff] %v178
        %s180 = scalar_lea.vmem %s97, 8 [#allocation0]
        %v181 = vld [vmem:[%s180] sm:$0xff]
        %s182 = scalar_lea.vmem %s105, 8 [#allocation1]
        %v183 = vld [vmem:[%s182] sm:$0xff]
        %v184 = vmul.f32 %v183, %v151
        %185 = vadd.xlane.f32.xlu0 %v184
        %v186 = vpop.xlane.xlu0 %185
        %v187 = vsub.f32 %v181, %v186
        %v188 = vmul.f32 %v187, %v167
        %v189 = vsel %vm149, %v188, 0.0
        %v190 = vadd.f32 %v183, %v189
        %s191 = scalar_lea.vmem %s105, 8 [#allocation1]
        %192 = vst [vmem:[%s191] sm:$0xff] %v190
        %vm193 = vcmask 23568
        %s194 = scalar_lea.vmem %s105, 2 [#allocation1]
        %v195 = vld [vmem:[%s194] ss:$0 sm:$0xff]
        %s196 = scalar_lea.vmem %s97, 2 [#allocation0]
        %v197 = vld [vmem:[%s196] ss:$0 sm:$0xff]
        %v198 = vmul.f32 %v195, %v195
        %199 = vadd.xlane.f32.xlu0 %v198
        %v200 = vpop.xlane.xlu0 %199
        %v201 = vsub.f32 %v197, %v200
        %v202 = vrsqrt.pop %v201
        %v203 = vmul.f32 %v202, %v201
        %v204 = vmul.f32 %v203, %v202
        %v205 = vmul.f32 0.5, %v204
        %v206 = vsub.f32 1.5, %v205
        %v207 = vmul.f32 %v202, %v206
        %vm208 = vweird.f32 %v201
        %vm209 = vweird.f32 %v202
        %vm210 = vmor %vm208, %vm209
        %v211 = vsel %vm210, %v202, %v207
        %v212 = vld [vmem:[%s97] sm:$0xff]
        %v213 = vld [vmem:[%s105] sm:$0xff]
        %v214 = vmul.f32 %v213, %v195
        %215 = vadd.xlane.f32.xlu0 %v214
        %v216 = vpop.xlane.xlu0 %215
        %v217 = vsub.f32 %v212, %v216
        %v218 = vmul.f32 %v217, %v211
        %vm219 = vcmask 1047554
        %vm220 = vmand %vm193, %vm219
        %v221 = vsel %vm220, %v218, 0.0
        %v222 = vadd.f32 %v213, %v221
        %223 = vst [vmem:[%s105] sm:$0xff] %v222
        %s224 = scalar_lea.vmem %s97, 8 [#allocation0]
        %v225 = vld [vmem:[%s224] sm:$0xff]
        %s226 = scalar_lea.vmem %s105, 8 [#allocation1]
        %v227 = vld [vmem:[%s226] sm:$0xff]
        %v228 = vmul.f32 %v227, %v195
        %229 = vadd.xlane.f32.xlu0 %v228
        %v230 = vpop.xlane.xlu0 %229
        %v231 = vsub.f32 %v225, %v230
        %v232 = vmul.f32 %v231, %v211
        %v233 = vsel %vm193, %v232, 0.0
        %v234 = vadd.f32 %v227, %v233
        %s235 = scalar_lea.vmem %s105, 8 [#allocation1]
        %236 = vst [vmem:[%s235] sm:$0xff] %v234
        %vm237 = vcmask 31768
        %s238 = scalar_lea.vmem %s105, 3 [#allocation1]
        %v239 = vld [vmem:[%s238] ss:$0 sm:$0xff]
        %s240 = scalar_lea.vmem %s97, 3 [#allocation0]
        %v241 = vld [vmem:[%s240] ss:$0 sm:$0xff]
        %v242 = vmul.f32 %v239, %v239
        %243 = vadd.xlane.f32.xlu0 %v242
        %v244 = vpop.xlane.xlu0 %243
        %v245 = vsub.f32 %v241, %v244
        %v246 = vrsqrt.pop %v245
        %v247 = vmul.f32 %v246, %v245
        %v248 = vmul.f32 %v247, %v246
        %v249 = vmul.f32 0.5, %v248
        %v250 = vsub.f32 1.5, %v249
        %v251 = vmul.f32 %v246, %v250
        %vm252 = vweird.f32 %v245
        %vm253 = vweird.f32 %v246
        %vm254 = vmor %vm252, %vm253
        %v255 = vsel %vm254, %v246, %v251
        %v256 = vld [vmem:[%s97] sm:$0xff]
        %v257 = vld [vmem:[%s105] sm:$0xff]
        %v258 = vmul.f32 %v257, %v239
        %259 = vadd.xlane.f32.xlu0 %v258
        %v260 = vpop.xlane.xlu0 %259
        %v261 = vsub.f32 %v256, %v260
        %v262 = vmul.f32 %v261, %v255
        %vm263 = vcmask 1047555
        %vm264 = vmand %vm237, %vm263
        %v265 = vsel %vm264, %v262, 0.0
        %v266 = vadd.f32 %v257, %v265
        %267 = vst [vmem:[%s105] sm:$0xff] %v266
        %s268 = scalar_lea.vmem %s97, 8 [#allocation0]
        %v269 = vld [vmem:[%s268] sm:$0xff]
        %s270 = scalar_lea.vmem %s105, 8 [#allocation1]
        %v271 = vld [vmem:[%s270] sm:$0xff]
        %v272 = vmul.f32 %v271, %v239
        %273 = vadd.xlane.f32.xlu0 %v272
        %v274 = vpop.xlane.xlu0 %273
        %v275 = vsub.f32 %v269, %v274
        %v276 = vmul.f32 %v275, %v255
        %v277 = vsel %vm237, %v276, 0.0
        %v278 = vadd.f32 %v271, %v277
        %s279 = scalar_lea.vmem %s105, 8 [#allocation1]
        %280 = vst [vmem:[%s279] sm:$0xff] %v278
        %vm281 = vcmask 39968
        %s282 = scalar_lea.vmem %s105, 4 [#allocation1]
        %v283 = vld [vmem:[%s282] ss:$0 sm:$0xff]
        %s284 = scalar_lea.vmem %s97, 4 [#allocation0]
        %v285 = vld [vmem:[%s284] ss:$0 sm:$0xff]
        %v286 = vmul.f32 %v283, %v283
        %287 = vadd.xlane.f32.xlu0 %v286
        %v288 = vpop.xlane.xlu0 %287
        %v289 = vsub.f32 %v285, %v288
        %v290 = vrsqrt.pop %v289
        %v291 = vmul.f32 %v290, %v289
        %v292 = vmul.f32 %v291, %v290
        %v293 = vmul.f32 0.5, %v292
        %v294 = vsub.f32 1.5, %v293
        %v295 = vmul.f32 %v290, %v294
        %vm296 = vweird.f32 %v289
        %vm297 = vweird.f32 %v290
        %vm298 = vmor %vm296, %vm297
        %v299 = vsel %vm298, %v290, %v295
        %v300 = vld [vmem:[%s97] sm:$0xff]
        %v301 = vld [vmem:[%s105] sm:$0xff]
        %v302 = vmul.f32 %v301, %v283
        %303 = vadd.xlane.f32.xlu0 %v302
        %v304 = vpop.xlane.xlu0 %303
        %v305 = vsub.f32 %v300, %v304
        %v306 = vmul.f32 %v305, %v299
        %vm307 = vcmask 1047556
        %vm308 = vmand %vm281, %vm307
        %v309 = vsel %vm308, %v306, 0.0
        %v310 = vadd.f32 %v301, %v309
        %311 = vst [vmem:[%s105] sm:$0xff] %v310
        %s312 = scalar_lea.vmem %s97, 8 [#allocation0]
        %v313 = vld [vmem:[%s312] sm:$0xff]
        %s314 = scalar_lea.vmem %s105, 8 [#allocation1]
        %v315 = vld [vmem:[%s314] sm:$0xff]
        %v316 = vmul.f32 %v315, %v283
        %317 = vadd.xlane.f32.xlu0 %v316
        %v318 = vpop.xlane.xlu0 %317
        %v319 = vsub.f32 %v313, %v318
        %v320 = vmul.f32 %v319, %v299
        %v321 = vsel %vm281, %v320, 0.0
        %v322 = vadd.f32 %v315, %v321
        %s323 = scalar_lea.vmem %s105, 8 [#allocation1]
        %324 = vst [vmem:[%s323] sm:$0xff] %v322
        %vm325 = vcmask 48168
        %s326 = scalar_lea.vmem %s105, 5 [#allocation1]
        %v327 = vld [vmem:[%s326] ss:$0 sm:$0xff]
        %s328 = scalar_lea.vmem %s97, 5 [#allocation0]
        %v329 = vld [vmem:[%s328] ss:$0 sm:$0xff]
        %v330 = vmul.f32 %v327, %v327
        %331 = vadd.xlane.f32.xlu0 %v330
        %v332 = vpop.xlane.xlu0 %331
        %v333 = vsub.f32 %v329, %v332
        %v334 = vrsqrt.pop %v333
        %v335 = vmul.f32 %v334, %v333
        %v336 = vmul.f32 %v335, %v334
        %v337 = vmul.f32 0.5, %v336
        %v338 = vsub.f32 1.5, %v337
        %v339 = vmul.f32 %v334, %v338
        %vm340 = vweird.f32 %v333
        %vm341 = vweird.f32 %v334
        %vm342 = vmor %vm340, %vm341
        %v343 = vsel %vm342, %v334, %v339
        %v344 = vld [vmem:[%s97] sm:$0xff]
        %v345 = vld [vmem:[%s105] sm:$0xff]
        %v346 = vmul.f32 %v345, %v327
        %347 = vadd.xlane.f32.xlu0 %v346
        %v348 = vpop.xlane.xlu0 %347
        %v349 = vsub.f32 %v344, %v348
        %v350 = vmul.f32 %v349, %v343
        %vm351 = vcmask 1047557
        %vm352 = vmand %vm325, %vm351
        %v353 = vsel %vm352, %v350, 0.0
        %v354 = vadd.f32 %v345, %v353
        %355 = vst [vmem:[%s105] sm:$0xff] %v354
        %s356 = scalar_lea.vmem %s97, 8 [#allocation0]
        %v357 = vld [vmem:[%s356] sm:$0xff]
        %s358 = scalar_lea.vmem %s105, 8 [#allocation1]
        %v359 = vld [vmem:[%s358] sm:$0xff]
        %v360 = vmul.f32 %v359, %v327
        %361 = vadd.xlane.f32.xlu0 %v360
        %v362 = vpop.xlane.xlu0 %361
        %v363 = vsub.f32 %v357, %v362
        %v364 = vmul.f32 %v363, %v343
        %v365 = vsel %vm325, %v364, 0.0
        %v366 = vadd.f32 %v359, %v365
        %s367 = scalar_lea.vmem %s105, 8 [#allocation1]
        %368 = vst [vmem:[%s367] sm:$0xff] %v366
        %vm369 = vcmask 56368
        %s370 = scalar_lea.vmem %s105, 6 [#allocation1]
        %v371 = vld [vmem:[%s370] ss:$0 sm:$0xff]
        %s372 = scalar_lea.vmem %s97, 6 [#allocation0]
        %v373 = vld [vmem:[%s372] ss:$0 sm:$0xff]
        %v374 = vmul.f32 %v371, %v371
        %375 = vadd.xlane.f32.xlu0 %v374
        %v376 = vpop.xlane.xlu0 %375
        %v377 = vsub.f32 %v373, %v376
        %v378 = vrsqrt.pop %v377
        %v379 = vmul.f32 %v378, %v377
        %v380 = vmul.f32 %v379, %v378
        %v381 = vmul.f32 0.5, %v380
        %v382 = vsub.f32 1.5, %v381
        %v383 = vmul.f32 %v378, %v382
        %vm384 = vweird.f32 %v377
        %vm385 = vweird.f32 %v378
        %vm386 = vmor %vm384, %vm385
        %v387 = vsel %vm386, %v378, %v383
        %v388 = vld [vmem:[%s97] sm:$0xff]
        %v389 = vld [vmem:[%s105] sm:$0xff]
        %v390 = vmul.f32 %v389, %v371
        %391 = vadd.xlane.f32.xlu0 %v390
        %v392 = vpop.xlane.xlu0 %391
        %v393 = vsub.f32 %v388, %v392
        %v394 = vmul.f32 %v393, %v387
        %vm395 = vcmask 1047558
        %vm396 = vmand %vm369, %vm395
        %v397 = vsel %vm396, %v394, 0.0
        %v398 = vadd.f32 %v389, %v397
        %399 = vst [vmem:[%s105] sm:$0xff] %v398
        %s400 = scalar_lea.vmem %s97, 8 [#allocation0]
        %v401 = vld [vmem:[%s400] sm:$0xff]
        %s402 = scalar_lea.vmem %s105, 8 [#allocation1]
        %v403 = vld [vmem:[%s402] sm:$0xff]
        %v404 = vmul.f32 %v403, %v371
        %405 = vadd.xlane.f32.xlu0 %v404
        %v406 = vpop.xlane.xlu0 %405
        %v407 = vsub.f32 %v401, %v406
        %v408 = vmul.f32 %v407, %v387
        %v409 = vsel %vm369, %v408, 0.0
        %v410 = vadd.f32 %v403, %v409
        %s411 = scalar_lea.vmem %s105, 8 [#allocation1]
        %412 = vst [vmem:[%s411] sm:$0xff] %v410
        %vm413 = vcmask 64568
        %s414 = scalar_lea.vmem %s105, 7 [#allocation1]
        %v415 = vld [vmem:[%s414] ss:$0 sm:$0xff]
        %s416 = scalar_lea.vmem %s97, 7 [#allocation0]
        %v417 = vld [vmem:[%s416] ss:$0 sm:$0xff]
        %v418 = vmul.f32 %v415, %v415
        %419 = vadd.xlane.f32.xlu0 %v418
        %v420 = vpop.xlane.xlu0 %419
        %v421 = vsub.f32 %v417, %v420
        %v422 = vrsqrt.pop %v421
        %v423 = vmul.f32 %v422, %v421
        %v424 = vmul.f32 %v423, %v422
        %v425 = vmul.f32 0.5, %v424
        %v426 = vsub.f32 1.5, %v425
        %v427 = vmul.f32 %v422, %v426
        %vm428 = vweird.f32 %v421
        %vm429 = vweird.f32 %v422
        %vm430 = vmor %vm428, %vm429
        %v431 = vsel %vm430, %v422, %v427
        %v432 = vld [vmem:[%s97] sm:$0xff]
        %v433 = vld [vmem:[%s105] sm:$0xff]
        %v434 = vmul.f32 %v433, %v415
        %435 = vadd.xlane.f32.xlu0 %v434
        %v436 = vpop.xlane.xlu0 %435
        %v437 = vsub.f32 %v432, %v436
        %v438 = vmul.f32 %v437, %v431
        %vm439 = vcmask 1047559
        %vm440 = vmand %vm413, %vm439
        %v441 = vsel %vm440, %v438, 0.0
        %v442 = vadd.f32 %v433, %v441
        %443 = vst [vmem:[%s105] sm:$0xff] %v442
        %s444 = scalar_lea.vmem %s97, 8 [#allocation0]
        %v445 = vld [vmem:[%s444] sm:$0xff]
        %s446 = scalar_lea.vmem %s105, 8 [#allocation1]
        %v447 = vld [vmem:[%s446] sm:$0xff]
        %v448 = vmul.f32 %v447, %v415
        %449 = vadd.xlane.f32.xlu0 %v448
        %v450 = vpop.xlane.xlu0 %449
        %v451 = vsub.f32 %v445, %v450
        %v452 = vmul.f32 %v451, %v431
        %v453 = vsel %vm413, %v452, 0.0
        %v454 = vadd.f32 %v447, %v453
        %s455 = scalar_lea.vmem %s105, 8 [#allocation1]
        %456 = vst [vmem:[%s455] sm:$0xff] %v454
        %vm457 = vcmask 72768
        %s458 = scalar_lea.vmem %s105, 8 [#allocation1]
        %v459 = vld [vmem:[%s458] ss:$0 sm:$0xff]
        %s460 = scalar_lea.vmem %s97, 8 [#allocation0]
        %v461 = vld [vmem:[%s460] ss:$0 sm:$0xff]
        %v462 = vmul.f32 %v459, %v459
        %463 = vadd.xlane.f32.xlu0 %v462
        %v464 = vpop.xlane.xlu0 %463
        %v465 = vsub.f32 %v461, %v464
        %v466 = vrsqrt.pop %v465
        %v467 = vmul.f32 %v466, %v465
        %v468 = vmul.f32 %v467, %v466
        %v469 = vmul.f32 0.5, %v468
        %v470 = vsub.f32 1.5, %v469
        %v471 = vmul.f32 %v466, %v470
        %vm472 = vweird.f32 %v465
        %vm473 = vweird.f32 %v466
        %vm474 = vmor %vm472, %vm473
        %v475 = vsel %vm474, %v466, %v471
        %s476 = scalar_lea.vmem %s97, 8 [#allocation0]
        %v477 = vld [vmem:[%s476] sm:$0xff]
        %s478 = scalar_lea.vmem %s105, 8 [#allocation1]
        %v479 = vld [vmem:[%s478] sm:$0xff]
        %v480 = vmul.f32 %v479, %v459
        %481 = vadd.xlane.f32.xlu0 %v480
        %v482 = vpop.xlane.xlu0 %481
        %v483 = vsub.f32 %v477, %v482
        %v484 = vmul.f32 %v483, %v475
        %v485 = vsel %vm457, %v484, 0.0
        %v486 = vadd.f32 %v479, %v485
        %s487 = scalar_lea.vmem %s105, 8 [#allocation1]
        %488 = vst [vmem:[%s487] sm:$0xff] %v486
        %vm489 = vcmask 80968
        %s490 = scalar_lea.vmem %s105, 9 [#allocation1]
        %v491 = vld [vmem:[%s490] ss:$0 sm:$0xff]
        %s492 = scalar_lea.vmem %s97, 9 [#allocation0]
        %v493 = vld [vmem:[%s492] ss:$0 sm:$0xff]
        %v494 = vmul.f32 %v491, %v491
        %495 = vadd.xlane.f32.xlu0 %v494
        %v496 = vpop.xlane.xlu0 %495
        %v497 = vsub.f32 %v493, %v496
        %v498 = vrsqrt.pop %v497
        %v499 = vmul.f32 %v498, %v497
        %v500 = vmul.f32 %v499, %v498
        %v501 = vmul.f32 0.5, %v500
        %v502 = vsub.f32 1.5, %v501
        %v503 = vmul.f32 %v498, %v502
        %vm504 = vweird.f32 %v497
        %vm505 = vweird.f32 %v498
        %vm506 = vmor %vm504, %vm505
        %v507 = vsel %vm506, %v498, %v503
        %s508 = scalar_lea.vmem %s97, 8 [#allocation0]
        %v509 = vld [vmem:[%s508] sm:$0xff]
        %s510 = scalar_lea.vmem %s105, 8 [#allocation1]
        %v511 = vld [vmem:[%s510] sm:$0xff]
        %v512 = vmul.f32 %v511, %v491
        %513 = vadd.xlane.f32.xlu0 %v512
        %v514 = vpop.xlane.xlu0 %513
        %v515 = vsub.f32 %v509, %v514
        %v516 = vmul.f32 %v515, %v507
        %vm517 = vcmask 1047553
        %vm518 = vmand %vm489, %vm517
        %v519 = vsel %vm518, %v516, 0.0
        %v520 = vadd.f32 %v511, %v519
        %s521 = scalar_lea.vmem %s105, 8 [#allocation1]
        %522 = vst [vmem:[%s521] sm:$0xff] %v520
        %s523 = sand.u32 %s8, 1
        %s524 = sand.u32 %s8, 1
        %s525 = smul.addr %s524, 16
        %s526 = scalar_lea.vmem [#allocation1], %s525
        %s527 = sadd.s32 %s15, %s14
        %s528 = smul.addr %s13, 2
        %s529 = sadd.s32 %s527, %s528
        %s530 = smul.addr %s529, 8
        %s531 = scalar_lea.vmem %s1, %s530
        // Predicated region
        $region55: #{custom-call.29} parent=53 // pred_check
          _
        $region56: #{custom-call.29} parent=53 // pred_check_branch
          %533 = sbr.rel (0) target = $region58
        $region57: #{custom-call.29} parent=53 // pred_region
          // Predicated region
          $region59: #{custom-call.29} parent=57 // pred_check
            _
          $region60: #{custom-call.29} parent=57 // pred_check_branch
            %535 = sbr.rel (0) target = $region62
          $region61: #{custom-call.29} parent=57 // pred_region
            // Predicated region
            $region74: #{custom-call.29} parent=61 // pred_check
              _
            $region75: #{custom-call.29} parent=61 // pred_check_branch
              %553 = sbr.rel (0) target = $region77
            $region76: #{custom-call.29} parent=61 // pred_region
              loop: start=0, step=1, limit=1
              $region78: #{custom-call.29} parent=76 // loop_pre_header
                _
              $region79: #{custom-call.29} parent=76 // loop_header
                %s555 = sphi 0, %s559
                %p556 = scmp.ge.s32.totalorder %s555, 1
                %s560 = sphi %s526, %s526
                %s561 = sphi %s531, %s531
              $region80: #{custom-call.29} parent=76 // loop_header_branch
                %558 = sbr.rel (%p556) target = $region84
              $region81: #{custom-call.29} parent=76 // loop_body
                %v562 = vld [vmem:[%s560] sm:$0xff]
                %563 = vst [vmem:[%s561] sm:$0xff] %v562
                %v564 = vld [vmem:[%s560 + $0x8] sm:$0xff]
                %565 = vst [vmem:[%s561 + $0x8] sm:$0xff] %v564
              $region82: #{custom-call.29} parent=76 // loop_footer
                %s559 = sadd.s32 1, %s555
              $region83: #{custom-call.29} parent=76 // loop_footer_branch
                %554 = sbr.rel target = $region79
              $region84: #{custom-call.29} parent=76 // loop_exit
                _
            $region77: #{custom-call.29} parent=61 // pred_fallthru
              _
            // Predicated region
            $region85: #{custom-call.29} parent=61 // pred_check
              _
            $region86: #{custom-call.29} parent=61 // pred_check_branch
              %567 = sbr.rel target = $region88
            $region87: #{custom-call.29} parent=61 // pred_region
              _
            $region88: #{custom-call.29} parent=61 // pred_fallthru
              _
          $region62: #{custom-call.29} parent=57 // pred_fallthru
            _
          // Predicated region
          $region63: #{custom-call.29} parent=57 // pred_check
            _
          $region64: #{custom-call.29} parent=57 // pred_check_branch
            %537 = sbr.rel target = $region66
          $region65: #{custom-call.29} parent=57 // pred_region
            %s539 = ssub.s32 256, 1
            loop: start=0, step=1, limit=1
            $region67: #{custom-call.29} parent=65 // loop_pre_header
              _
            $region68: #{custom-call.29} parent=65 // loop_header
              %s541 = sphi 0, %s545
              %p542 = scmp.ge.s32.totalorder %s541, 1
              %s546 = sphi %s526, %s526
              %s547 = sphi %s531, %s531
            $region69: #{custom-call.29} parent=65 // loop_header_branch
              %544 = sbr.rel (%p542) target = $region73
            $region70: #{custom-call.29} parent=65 // loop_body
              %v548 = vld [vmem:[%s546] sm:%s539]
              %549 = vst [vmem:[%s547] sm:%s539] %v548
              %v550 = vld [vmem:[%s546 + $0x8] sm:%s539]
              %551 = vst [vmem:[%s547 + $0x8] sm:%s539] %v550
            $region71: #{custom-call.29} parent=65 // loop_footer
              %s545 = sadd.s32 1, %s541
            $region72: #{custom-call.29} parent=65 // loop_footer_branch
              %540 = sbr.rel target = $region68
            $region73: #{custom-call.29} parent=65 // loop_exit
              _
          $region66: #{custom-call.29} parent=57 // pred_fallthru
            _
        $region58: #{custom-call.29} parent=53 // pred_fallthru
          _
        %568 = vnop
      $region54: #{custom-call.29} parent=5 // pred_fallthru
        _
      %p569 = scmp.le.s32.totalorder 2, %s3
      // Predicated region
      $region89: #{custom-call.29} parent=5 // pred_check
        %p570 = pneg %p569
      $region90: #{custom-call.29} parent=5 // pred_check_branch
        %572 = sbr.rel (%p570) target = $region92
      $region91: #{custom-call.29} parent=5 // pred_region
        %s573 = ssub.s32 %s3, 2
        %s574 = sand.u32 %s9, 1
        %s575 = sand.u32 %s9, 1
        %s576 = smul.addr %s575, 16
        %s577 = scalar_lea.vmem [#allocation1], %s576
      $region92: #{custom-call.29} parent=5 // pred_fallthru
        _
    $region6: #{custom-call.29} parent=1 // loop_footer
      %s7 = sadd.s32 1, %s3
    $region7: #{custom-call.29} parent=1 // loop_footer_branch
      %2 = sbr.rel target = $region3
    $region8: #{custom-call.29} parent=1 // loop_exit
      _

// kernel: custom-call.30
$region0: #{custom-call.30}
  %s0 = inlined_call_operand.vmem [shape: f32[2,1,10,10], index: 0, kind: input, shape index: {}]
  %s1 = inlined_call_operand.vmem [shape: f32[2,1,10,10], index: 1, kind: output, shape index: {}]
  $region1: #{custom-call.30} parent=0
    #allocation0 [shape = 'u8[16384]{0}', space=vmem, size = 0x4000, scoped, tag = 'operand span for operand 0']
    #allocation1 [shape = 'u8[16384]{0}', space=vmem, size = 0x4000, scoped, tag = 'operand span for operand 1']
    loop: start=0, step=1, limit=4
    $region2: #{custom-call.30} parent=1 // loop_pre_header
      _
    $region3: #{custom-call.30} parent=1 // loop_header
      %s3 = sphi 0, %s7
      %p4 = scmp.ge.s32.totalorder %s3, 4
      %s10 = sphi 0, %s36
      %s11 = sphi 0, %s32
      %s12 = sphi 0, %s28
      %s13 = sphi 0, %s24
      %s14 = sphi 0, %s10
      %s15 = sphi 0, %s11
      %s16 = sphi 0, %s12
      %s17 = sphi 0, %s13
      %s18 = sphi 0, %s14
      %s19 = sphi 0, %s15
      %s20 = sphi 0, %s16
      %s21 = sphi 0, %s17
    $region4: #{custom-call.30} parent=1 // loop_header_branch
      %6 = sbr.rel (%p4) target = $region8
    $region5: #{custom-call.30} parent=1 // loop_body
      %s8 = ssub.s32 %s3, 1
      %s9 = ssub.s32 %s3, 2
      %s22 = sadd.s32 1, %s13
      %p23 = scmp.ge.s32.totalorder %s22, 1
      %s24 = scalar_select %p23, 0, %s22
      %s25 = sadd.s32 1, %s12
      %s26 = scalar_select %p23, %s25, %s12
      %p27 = scmp.ge.s32.totalorder %s26, 1
      %s28 = scalar_select %p27, 0, %s26
      %s29 = sadd.s32 1, %s11
      %s30 = scalar_select %p27, %s29, %s11
      %p31 = scmp.ge.s32.totalorder %s30, 1
      %s32 = scalar_select %p31, 0, %s30
      %s33 = sadd.s32 1, %s10
      %s34 = scalar_select %p31, %s33, %s10
      %p35 = scmp.ge.s32.totalorder %s34, 2
      %s36 = scalar_select %p35, 0, %s34
      %p37 = scmp.le.s32.totalorder 1, %s3
      %p38 = scmp.lt.s32.totalorder %s3, 3
      %p39 = pnand %p37, %p38
      %p40 = pneg %p39
      // Predicated region
      $region9: #{custom-call.30} parent=5 // pred_check
        _
      $region10: #{custom-call.30} parent=5 // pred_check_branch
        %42 = sbr.rel (%p39) target = $region12
      $region11: #{custom-call.30} parent=5 // pred_region
        %s43 = ssub.s32 %s3, 1
      $region12: #{custom-call.30} parent=5 // pred_fallthru
        _
      %p44 = scmp.lt.s32.totalorder %s3, 2
      // Predicated region
      $region13: #{custom-call.30} parent=5 // pred_check
        %p45 = pneg %p44
      $region14: #{custom-call.30} parent=5 // pred_check_branch
        %47 = sbr.rel (%p45) target = $region16
      $region15: #{custom-call.30} parent=5 // pred_region
        %s48 = sand.u32 %s3, 1
        %s49 = sand.u32 %s3, 1
        %s50 = smul.addr %s49, 16
        %s51 = scalar_lea.vmem [#allocation0], %s50
        %s52 = sadd.s32 %s13, %s12
        %s53 = smul.addr %s11, 2
        %s54 = sadd.s32 %s52, %s53
        %s55 = smul.addr %s10, 2
        %s56 = sadd.s32 %s54, %s55
        %s57 = smul.addr %s56, 8
        %s58 = scalar_lea.vmem %s0, %s57
        // Predicated region
        $region17: #{custom-call.30} parent=15 // pred_check
          _
        $region18: #{custom-call.30} parent=15 // pred_check_branch
          %60 = sbr.rel (0) target = $region20
        $region19: #{custom-call.30} parent=15 // pred_region
          // Predicated region
          $region21: #{custom-call.30} parent=19 // pred_check
            _
          $region22: #{custom-call.30} parent=19 // pred_check_branch
            %62 = sbr.rel (0) target = $region24
          $region23: #{custom-call.30} parent=19 // pred_region
            // Predicated region
            $region36: #{custom-call.30} parent=23 // pred_check
              _
            $region37: #{custom-call.30} parent=23 // pred_check_branch
              %80 = sbr.rel (0) target = $region39
            $region38: #{custom-call.30} parent=23 // pred_region
              loop: start=0, step=1, limit=1
              $region40: #{custom-call.30} parent=38 // loop_pre_header
                _
              $region41: #{custom-call.30} parent=38 // loop_header
                %s82 = sphi 0, %s86
                %p83 = scmp.ge.s32.totalorder %s82, 1
                %s87 = sphi %s58, %s58
                %s88 = sphi %s51, %s51
              $region42: #{custom-call.30} parent=38 // loop_header_branch
                %85 = sbr.rel (%p83) target = $region46
              $region43: #{custom-call.30} parent=38 // loop_body
                %v89 = vld [vmem:[%s87] sm:$0xff]
                %90 = vst [vmem:[%s88] sm:$0xff] %v89
                %v91 = vld [vmem:[%s87 + $0x8] sm:$0xff]
                %92 = vst [vmem:[%s88 + $0x8] sm:$0xff] %v91
              $region44: #{custom-call.30} parent=38 // loop_footer
                %s86 = sadd.s32 1, %s82
              $region45: #{custom-call.30} parent=38 // loop_footer_branch
                %81 = sbr.rel target = $region41
              $region46: #{custom-call.30} parent=38 // loop_exit
                _
            $region39: #{custom-call.30} parent=23 // pred_fallthru
              _
            // Predicated region
            $region47: #{custom-call.30} parent=23 // pred_check
              _
            $region48: #{custom-call.30} parent=23 // pred_check_branch
              %94 = sbr.rel target = $region50
            $region49: #{custom-call.30} parent=23 // pred_region
              _
            $region50: #{custom-call.30} parent=23 // pred_fallthru
              _
          $region24: #{custom-call.30} parent=19 // pred_fallthru
            _
          // Predicated region
          $region25: #{custom-call.30} parent=19 // pred_check
            _
          $region26: #{custom-call.30} parent=19 // pred_check_branch
            %64 = sbr.rel target = $region28
          $region27: #{custom-call.30} parent=19 // pred_region
            %s66 = ssub.s32 256, 1
            loop: start=0, step=1, limit=1
            $region29: #{custom-call.30} parent=27 // loop_pre_header
              _
            $region30: #{custom-call.30} parent=27 // loop_header
              %s68 = sphi 0, %s72
              %p69 = scmp.ge.s32.totalorder %s68, 1
              %s73 = sphi %s58, %s58
              %s74 = sphi %s51, %s51
            $region31: #{custom-call.30} parent=27 // loop_header_branch
              %71 = sbr.rel (%p69) target = $region35
            $region32: #{custom-call.30} parent=27 // loop_body
              %v75 = vld [vmem:[%s73] sm:%s66]
              %76 = vst [vmem:[%s74] sm:%s66] %v75
              %v77 = vld [vmem:[%s73 + $0x8] sm:%s66]
              %78 = vst [vmem:[%s74 + $0x8] sm:%s66] %v77
            $region33: #{custom-call.30} parent=27 // loop_footer
              %s72 = sadd.s32 1, %s68
            $region34: #{custom-call.30} parent=27 // loop_footer_branch
              %67 = sbr.rel target = $region30
            $region35: #{custom-call.30} parent=27 // loop_exit
              _
          $region28: #{custom-call.30} parent=19 // pred_fallthru
            _
        $region20: #{custom-call.30} parent=15 // pred_fallthru
          _
        %95 = vnop
      $region16: #{custom-call.30} parent=5 // pred_fallthru
        _
      %p96 = scmp.le.s32.totalorder 1, %s3
      %p97 = scmp.lt.s32.totalorder %s3, 3
      %p98 = pnand %p96, %p97
      %p99 = pneg %p98
      // Predicated region
      $region51: #{custom-call.30} parent=5 // pred_check
        _
      $region52: #{custom-call.30} parent=5 // pred_check_branch
        %101 = sbr.rel (%p98) target = $region54
      $region53: #{custom-call.30} parent=5 // pred_region
        #allocation2 [shape = 'f32[10,10]{1,0}', space=vmem, size = 0x2000, scoped, tag = 'rescaled input a']
        %s102 = ssub.s32 %s3, 1
        %s103 = sand.u32 %s8, 1
        %s104 = sand.u32 %s8, 1
        %s105 = smul.addr %s104, 16
        %s106 = scalar_lea.vmem [#allocation0], %s105
        %s107 = sand.u32 %s8, 1
        %s108 = sand.u32 %s8, 1
        %s109 = smul.addr %s108, 16
        %s110 = scalar_lea.vmem [#allocation0], %s109
        %s111 = sand.u32 %s8, 1
        %s112 = sand.u32 %s8, 1
        %s113 = smul.addr %s112, 16
        %s114 = scalar_lea.vmem [#allocation1], %s113
        %v115 = vlaneseq
        %v116 = vand.u32 %v115, 127
        %vm117 = vcmp.lt.s32.totalorder %v116, 10
        %v118 = vlaneseq
        %v119 = vshrl.u32 %v118, 7
        %vm121 = vcmp.eq.s32.totalorder %v119, %v116
        %v122 = vld [vmem:[%s106] sm:$0xff]
        %v123 = vsel %vm121, %v122, 0.0
        %124 = vadd.xlane.f32.xlu0 %v123
        %v125 = vpop.xlane.xlu0 %124
        %vm126 = vcmp.ge.s32.totalorder %v119, %v116
        %vm127 = vmand %vm126, %vm117
        %v128 = vsel %vm127, %v122, 0.0
        %v129 = vrcp.pop %v125
        %v130 = vmul.f32 %v125, %v129
        %v131 = vsub.f32 1.0, %v130
        %v132 = vmul.f32 %v129, %v131
        %v133 = vadd.f32 %v129, %v132
        %vm134 = vweird.f32 %v125
        %vm135 = vweird.f32 %v129
        %vm136 = vmor %vm134, %vm135
        %v137 = vsel %vm136, %v129, %v133
        %v138 = vand.u32 2147483647, %v125
        %vm139 = vcmp.eq.f32.partialorder %v138, 8.507059e+37
        %v140 = vand.u32 %v125, 2147483648
        %v141 = vor.u32 1.1754944e-38, %v140
        %v142 = vsel %vm139, %v141, %v137
        %v143 = vmul.f32 %v128, %v142
        %144 = vst [vmem:[#allocation2] sm:$0xff] %v143
        %s145 = scalar_lea.vmem %s106, 8 [#allocation0]
        %s146 = scalar_lea.vmem [#allocation2], 8
        %v147 = vlaneseq
        %v148 = vshrl.u32 %v147, 7
        %v149 = vadd.s32 %v148, 8
        %vm150 = vcmp.eq.s32.totalorder %v149, %v116
        %v151 = vld [vmem:[%s145] sm:$0xff]
        %v152 = vsel %vm150, %v151, 0.0
        %153 = vadd.xlane.f32.xlu0 %v152
        %v154 = vpop.xlane.xlu0 %153
        %vm155 = vcmp.ge.s32.totalorder %v149, %v116
        %vm156 = vmand %vm155, %vm117
        %v157 = vsel %vm156, %v151, 0.0
        %v158 = vrcp.pop %v154
        %v159 = vmul.f32 %v154, %v158
        %v160 = vsub.f32 1.0, %v159
        %v161 = vmul.f32 %v158, %v160
        %v162 = vadd.f32 %v158, %v161
        %vm163 = vweird.f32 %v154
        %vm164 = vweird.f32 %v158
        %vm165 = vmor %vm163, %vm164
        %v166 = vsel %vm165, %v158, %v162
        %v167 = vand.u32 2147483647, %v154
        %vm168 = vcmp.eq.f32.partialorder %v167, 8.507059e+37
        %v169 = vand.u32 %v154, 2147483648
        %v170 = vor.u32 1.1754944e-38, %v169
        %v171 = vsel %vm168, %v170, %v166
        %v172 = vmul.f32 %v157, %v171
        %173 = vst [vmem:[%s146] sm:$0xff] %v172
        %v174 = vlaneseq
        %v175 = vand.u32 %v174, 127
        %v176 = vlaneseq
        %v177 = vshrl.u32 %v176, 7
        %vm179 = vcmp.eq.s32.totalorder %v175, %v177
        %v180 = vlaneseq
        %v181 = vand.u32 %v180, 127
        %vm182 = vcmp.eq.s32.totalorder %v181, 0
        %v183 = vsel %vm182, 1.0, -1.0
        %v184 = vsel %vm179, %v183, 0.0
        %v185 = vlaneseq
        %v186 = vand.u32 %v185, 127
        %v187 = vlaneseq
        %v188 = vshrl.u32 %v187, 7
        %v189 = vadd.s32 %v188, 8
        %vm190 = vcmp.eq.s32.totalorder %v186, %v189
        %v191 = vsel %vm190, -1.0, 0.0
        %s192 = scalar_lea.vmem [#allocation2], 1
        %v193 = vld [vmem:[%s192] ss:$0 sm:$0xff]
        %v194 = vxor.u32 %v193, 2147483648
        %v195 = vlaneseq
        %v196 = vand.u32 %v195, 127
        %vm197 = vcmp.eq.s32.totalorder %v196, 1
        %v198 = vmul.f32 %v194, %v184
        %199 = vadd.xlane.f32.xlu0 %v198
        %v200 = vpop.xlane.xlu0 %199
        %v201 = vsel %vm197, %v200, %v184
        %s202 = scalar_lea.vmem [#allocation2], 2
        %v203 = vld [vmem:[%s202] ss:$0 sm:$0xff]
        %v204 = vxor.u32 %v203, 2147483648
        %v205 = vlaneseq
        %v206 = vand.u32 %v205, 127
        %vm207 = vcmp.eq.s32.totalorder %v206, 2
        %v208 = vmul.f32 %v204, %v201
        %209 = vadd.xlane.f32.xlu0 %v208
        %v210 = vpop.xlane.xlu0 %209
        %v211 = vsel %vm207, %v210, %v201
        %s212 = scalar_lea.vmem [#allocation2], 3
        %v213 = vld [vmem:[%s212] ss:$0 sm:$0xff]
        %v214 = vxor.u32 %v213, 2147483648
        %v215 = vlaneseq
        %v216 = vand.u32 %v215, 127
        %vm217 = vcmp.eq.s32.totalorder %v216, 3
        %v218 = vmul.f32 %v214, %v211
        %219 = vadd.xlane.f32.xlu0 %v218
        %v220 = vpop.xlane.xlu0 %219
        %v221 = vsel %vm217, %v220, %v211
        %s222 = scalar_lea.vmem [#allocation2], 4
        %v223 = vld [vmem:[%s222] ss:$0 sm:$0xff]
        %v224 = vxor.u32 %v223, 2147483648
        %v225 = vlaneseq
        %v226 = vand.u32 %v225, 127
        %vm227 = vcmp.eq.s32.totalorder %v226, 4
        %v228 = vmul.f32 %v224, %v221
        %229 = vadd.xlane.f32.xlu0 %v228
        %v230 = vpop.xlane.xlu0 %229
        %v231 = vsel %vm227, %v230, %v221
        %s232 = scalar_lea.vmem [#allocation2], 5
        %v233 = vld [vmem:[%s232] ss:$0 sm:$0xff]
        %v234 = vxor.u32 %v233, 2147483648
        %v235 = vlaneseq
        %v236 = vand.u32 %v235, 127
        %vm237 = vcmp.eq.s32.totalorder %v236, 5
        %v238 = vmul.f32 %v234, %v231
        %239 = vadd.xlane.f32.xlu0 %v238
        %v240 = vpop.xlane.xlu0 %239
        %v241 = vsel %vm237, %v240, %v231
        %s242 = scalar_lea.vmem [#allocation2], 6
        %v243 = vld [vmem:[%s242] ss:$0 sm:$0xff]
        %v244 = vxor.u32 %v243, 2147483648
        %v245 = vlaneseq
        %v246 = vand.u32 %v245, 127
        %vm247 = vcmp.eq.s32.totalorder %v246, 6
        %v248 = vmul.f32 %v244, %v241
        %249 = vadd.xlane.f32.xlu0 %v248
        %v250 = vpop.xlane.xlu0 %249
        %v251 = vsel %vm247, %v250, %v241
        %s252 = scalar_lea.vmem [#allocation2], 7
        %v253 = vld [vmem:[%s252] ss:$0 sm:$0xff]
        %v254 = vxor.u32 %v253, 2147483648
        %v255 = vlaneseq
        %v256 = vand.u32 %v255, 127
        %vm257 = vcmp.eq.s32.totalorder %v256, 7
        %v258 = vmul.f32 %v254, %v251
        %259 = vadd.xlane.f32.xlu0 %v258
        %v260 = vpop.xlane.xlu0 %259
        %v261 = vsel %vm257, %v260, %v251
        %s262 = scalar_lea.vmem [#allocation2], 8
        %v263 = vld [vmem:[%s262] ss:$0 sm:$0xff]
        %v264 = vxor.u32 %v263, 2147483648
        %v265 = vlaneseq
        %v266 = vand.u32 %v265, 127
        %vm267 = vcmp.eq.s32.totalorder %v266, 8
        %v268 = vmul.f32 %v264, %v261
        %269 = vadd.xlane.f32.xlu0 %v268
        %v270 = vpop.xlane.xlu0 %269
        %v271 = vsel %vm267, %v270, %v261
        %v272 = vmul.f32 %v264, %v191
        %273 = vadd.xlane.f32.xlu0 %v272
        %v274 = vpop.xlane.xlu0 %273
        %v275 = vsel %vm267, %v274, %v191
        %s276 = scalar_lea.vmem [#allocation2], 9
        %v277 = vld [vmem:[%s276] ss:$0 sm:$0xff]
        %v278 = vxor.u32 %v277, 2147483648
        %v279 = vlaneseq
        %v280 = vand.u32 %v279, 127
        %vm281 = vcmp.eq.s32.totalorder %v280, 9
        %v282 = vmul.f32 %v278, %v271
        %283 = vadd.xlane.f32.xlu0 %v282
        %v284 = vpop.xlane.xlu0 %283
        %v285 = vsel %vm281, %v284, %v271
        %v286 = vmul.f32 %v278, %v275
        %287 = vadd.xlane.f32.xlu0 %v286
        %v288 = vpop.xlane.xlu0 %287
        %v289 = vsel %vm281, %v288, %v275
        %v290 = vrcp.pop %v125
        %v291 = vmul.f32 %v125, %v290
        %v292 = vsub.f32 1.0, %v291
        %v293 = vmul.f32 %v290, %v292
        %v294 = vadd.f32 %v290, %v293
        %vm295 = vweird.f32 %v125
        %vm296 = vweird.f32 %v290
        %vm297 = vmor %vm295, %vm296
        %v298 = vsel %vm297, %v290, %v294
        %v299 = vand.u32 2147483647, %v125
        %vm300 = vcmp.eq.f32.partialorder %v299, 8.507059e+37
        %v301 = vand.u32 %v125, 2147483648
        %v302 = vor.u32 1.1754944e-38, %v301
        %v303 = vsel %vm300, %v302, %v298
        %v304 = vmul.f32 %v285, %v303
        %vm305 = vweird.f32 %v125
        %v306 = vsel %vm305, %v285, %v304
        %307 = vst [vmem:[%s114] sm:$0xff] %v306
        %v308 = vrcp.pop %v154
        %v309 = vmul.f32 %v154, %v308
        %v310 = vsub.f32 1.0, %v309
        %v311 = vmul.f32 %v308, %v310
        %v312 = vadd.f32 %v308, %v311
        %vm313 = vweird.f32 %v154
        %vm314 = vweird.f32 %v308
        %vm315 = vmor %vm313, %vm314
        %v316 = vsel %vm315, %v308, %v312
        %v317 = vand.u32 2147483647, %v154
        %vm318 = vcmp.eq.f32.partialorder %v317, 8.507059e+37
        %v319 = vand.u32 %v154, 2147483648
        %v320 = vor.u32 1.1754944e-38, %v319
        %v321 = vsel %vm318, %v320, %v316
        %v322 = vmul.f32 %v289, %v321
        %vm323 = vweird.f32 %v154
        %v324 = vsel %vm323, %v289, %v322
        %s325 = scalar_lea.vmem %s114, 8 [#allocation1]
        %326 = vst [vmem:[%s325] sm:$0xff] %v324
        %s327 = sand.u32 %s8, 1
        %s328 = sand.u32 %s8, 1
        %s329 = smul.addr %s328, 16
        %s330 = scalar_lea.vmem [#allocation1], %s329
        %s331 = sadd.s32 %s17, %s16
        %s332 = smul.addr %s15, 2
        %s333 = sadd.s32 %s331, %s332
        %s334 = smul.addr %s14, 2
        %s335 = sadd.s32 %s333, %s334
        %s336 = smul.addr %s335, 8
        %s337 = scalar_lea.vmem %s1, %s336
        // Predicated region
        $region55: #{custom-call.30} parent=53 // pred_check
          _
        $region56: #{custom-call.30} parent=53 // pred_check_branch
          %339 = sbr.rel (0) target = $region58
        $region57: #{custom-call.30} parent=53 // pred_region
          // Predicated region
          $region59: #{custom-call.30} parent=57 // pred_check
            _
          $region60: #{custom-call.30} parent=57 // pred_check_branch
            %341 = sbr.rel (0) target = $region62
          $region61: #{custom-call.30} parent=57 // pred_region
            // Predicated region
            $region74: #{custom-call.30} parent=61 // pred_check
              _
            $region75: #{custom-call.30} parent=61 // pred_check_branch
              %359 = sbr.rel (0) target = $region77
            $region76: #{custom-call.30} parent=61 // pred_region
              loop: start=0, step=1, limit=1
              $region78: #{custom-call.30} parent=76 // loop_pre_header
                _
              $region79: #{custom-call.30} parent=76 // loop_header
                %s361 = sphi 0, %s365
                %p362 = scmp.ge.s32.totalorder %s361, 1
                %s366 = sphi %s330, %s330
                %s367 = sphi %s337, %s337
              $region80: #{custom-call.30} parent=76 // loop_header_branch
                %364 = sbr.rel (%p362) target = $region84
              $region81: #{custom-call.30} parent=76 // loop_body
                %v368 = vld [vmem:[%s366] sm:$0xff]
                %369 = vst [vmem:[%s367] sm:$0xff] %v368
                %v370 = vld [vmem:[%s366 + $0x8] sm:$0xff]
                %371 = vst [vmem:[%s367 + $0x8] sm:$0xff] %v370
              $region82: #{custom-call.30} parent=76 // loop_footer
                %s365 = sadd.s32 1, %s361
              $region83: #{custom-call.30} parent=76 // loop_footer_branch
                %360 = sbr.rel target = $region79
              $region84: #{custom-call.30} parent=76 // loop_exit
                _
            $region77: #{custom-call.30} parent=61 // pred_fallthru
              _
            // Predicated region
            $region85: #{custom-call.30} parent=61 // pred_check
              _
            $region86: #{custom-call.30} parent=61 // pred_check_branch
              %373 = sbr.rel target = $region88
            $region87: #{custom-call.30} parent=61 // pred_region
              _
            $region88: #{custom-call.30} parent=61 // pred_fallthru
              _
          $region62: #{custom-call.30} parent=57 // pred_fallthru
            _
          // Predicated region
          $region63: #{custom-call.30} parent=57 // pred_check
            _
          $region64: #{custom-call.30} parent=57 // pred_check_branch
            %343 = sbr.rel target = $region66
          $region65: #{custom-call.30} parent=57 // pred_region
            %s345 = ssub.s32 256, 1
            loop: start=0, step=1, limit=1
            $region67: #{custom-call.30} parent=65 // loop_pre_header
              _
            $region68: #{custom-call.30} parent=65 // loop_header
              %s347 = sphi 0, %s351
              %p348 = scmp.ge.s32.totalorder %s347, 1
              %s352 = sphi %s330, %s330
              %s353 = sphi %s337, %s337
            $region69: #{custom-call.30} parent=65 // loop_header_branch
              %350 = sbr.rel (%p348) target = $region73
            $region70: #{custom-call.30} parent=65 // loop_body
              %v354 = vld [vmem:[%s352] sm:%s345]
              %355 = vst [vmem:[%s353] sm:%s345] %v354
              %v356 = vld [vmem:[%s352 + $0x8] sm:%s345]
              %357 = vst [vmem:[%s353 + $0x8] sm:%s345] %v356
            $region71: #{custom-call.30} parent=65 // loop_footer
              %s351 = sadd.s32 1, %s347
            $region72: #{custom-call.30} parent=65 // loop_footer_branch
              %346 = sbr.rel target = $region68
            $region73: #{custom-call.30} parent=65 // loop_exit
              _
          $region66: #{custom-call.30} parent=57 // pred_fallthru
            _
        $region58: #{custom-call.30} parent=53 // pred_fallthru
          _
        %374 = vnop
      $region54: #{custom-call.30} parent=5 // pred_fallthru
        _
      %p375 = scmp.le.s32.totalorder 2, %s3
      // Predicated region
      $region89: #{custom-call.30} parent=5 // pred_check
        %p376 = pneg %p375
      $region90: #{custom-call.30} parent=5 // pred_check_branch
        %378 = sbr.rel (%p376) target = $region92
      $region91: #{custom-call.30} parent=5 // pred_region
        %s379 = ssub.s32 %s3, 2
        %s380 = sand.u32 %s9, 1
        %s381 = sand.u32 %s9, 1
        %s382 = smul.addr %s381, 16
        %s383 = scalar_lea.vmem [#allocation1], %s382
      $region92: #{custom-call.30} parent=5 // pred_fallthru
        _
    $region6: #{custom-call.30} parent=1 // loop_footer
      %s7 = sadd.s32 1, %s3
    $region7: #{custom-call.30} parent=1 // loop_footer_branch
      %2 = sbr.rel target = $region3
    $region8: #{custom-call.30} parent=1 // loop_exit
      _

// kernel: resoptnet1_forward.2
$region0: #{resoptnet1_forward.2}
  #allocation0 [shape = 'u32[]', space=smem, size = 0x4, offset = 0x4, fixed_abs, tag = 'smem constant byte address 0x4 - core index']
  #allocation1 [shape = 'u32[72,128]{1,0:T(1,128)}', space=vmem, size = 0x9000, scoped, tag = 'internal scratch']
  %s0 = inlined_call_operand.vmem [shape: bf16[8,784], index: 0, kind: input, shape index: {}]
  %s1 = inlined_call_operand.hbm [shape: bf16[784,128], index: 1, kind: input, shape index: {}]
  %s2 = inlined_call_operand.vmem [shape: f32[1,128], index: 2, kind: input, shape index: {}]
  %s3 = inlined_call_operand.vmem [shape: f32[128,128], index: 3, kind: input, shape index: {}]
  %s4 = inlined_call_operand.vmem [shape: f32[1,128], index: 4, kind: input, shape index: {}]
  %s5 = inlined_call_operand.vmem [shape: f32[8,128], index: 5, kind: output, shape index: {}]
  %s6 = sld [smem:[#allocation0]]
  $region34: #{resoptnet1_forward.2} parent=0
    _
  %s8 = ssub.s32 1, %s6
  %s9 = scalar_select 0, %s8, %s6
  $region1: #{resoptnet1_forward.2} parent=0
    #allocation2 [shape = 'u8[200704]{0}', space=vmem, size = 0x31000, scoped, tag = 'input window, operand 1, single buffered']
    #allocation3 [shape = 's32[1]{0}', space=sflag, size = 0x4, scoped, tag = 'scoped memory for resoptnet1_forward.2']
    %10 = vsyncpa [#allocation3], 0
    // Predicated region
    $region2: #{resoptnet1_forward.2} parent=1 // pred_check
      _
    $region3: #{resoptnet1_forward.2} parent=1 // pred_check_branch
      %12 = sbr.rel (0) target = $region5
    $region4: #{resoptnet1_forward.2} parent=1 // pred_region
      _
    $region5: #{resoptnet1_forward.2} parent=1 // pred_fallthru
      _
    // Predicated region
    $region6: #{resoptnet1_forward.2} parent=1 // pred_check
      _
    $region7: #{resoptnet1_forward.2} parent=1 // pred_check_branch
      %14 = sbr.rel (0) target = $region9
    $region8: #{resoptnet1_forward.2} parent=1 // pred_region
      %16 = vsyncadd [#allocation3], 0
      %s17 = sshll.u32 %s1, 4
      %s18 = int_to_ptr.hbm [resolvable:$true] %s17
      %s19 = sshll.u32 [#allocation2], 4
      %s20 = int_to_ptr.vmem [resolvable:$true] %s19
      %25 = dma.hbm_to_vmem [thread:$0]  %s18, 6272, %s20, [#allocation3], 64, 64, 4
    $region9: #{resoptnet1_forward.2} parent=1 // pred_fallthru
      _
    // Predicated region
    $region10: #{resoptnet1_forward.2} parent=1 // pred_check
      _
    $region11: #{resoptnet1_forward.2} parent=1 // pred_check_branch
      %27 = sbr.rel (0) target = $region13
    $region12: #{resoptnet1_forward.2} parent=1 // pred_region
      _
    $region13: #{resoptnet1_forward.2} parent=1 // pred_fallthru
      _
    // Predicated region
    $region14: #{resoptnet1_forward.2} parent=1 // pred_check
      _
    $region15: #{resoptnet1_forward.2} parent=1 // pred_check_branch
      %29 = sbr.rel (0) target = $region17
    $region16: #{resoptnet1_forward.2} parent=1 // pred_region
      _
    $region17: #{resoptnet1_forward.2} parent=1 // pred_fallthru
      _
    // Predicated region
    $region18: #{resoptnet1_forward.2} parent=1 // pred_check
      _
    $region19: #{resoptnet1_forward.2} parent=1 // pred_check_branch
      %31 = sbr.rel (0) target = $region21
    $region20: #{resoptnet1_forward.2} parent=1 // pred_region
      _
    $region21: #{resoptnet1_forward.2} parent=1 // pred_fallthru
      _
    // Predicated region
    $region22: #{resoptnet1_forward.2} parent=1 // pred_check
      _
    $region23: #{resoptnet1_forward.2} parent=1 // pred_check_branch
      %33 = sbr.rel (0) target = $region25
    $region24: #{resoptnet1_forward.2} parent=1 // pred_region
      %35 = dma.done [#allocation3], 6272
    $region25: #{resoptnet1_forward.2} parent=1 // pred_fallthru
      _
    %v37 = vld [vmem:[%s0] sm:$0xff]
    %v38 = vld [vmem:[%s0 + $0x8] sm:$0xff]
    %v39 = vld [vmem:[%s0 + $0x10] sm:$0xff]
    %v40 = vld [vmem:[%s0 + $0x18] sm:$0xf]
    %v41 = vld [vmem:[#allocation2] sm:$0xf]
    %v42 = vld [vmem:[#allocation2 + $0x4] sm:$0xf]
    %v43 = vld [vmem:[#allocation2 + $0x8] sm:$0xf]
    %v44 = vld [vmem:[#allocation2 + $0xc] sm:$0xf]
    %v45 = vld [vmem:[#allocation2 + $0x10] sm:$0xf]
    %v46 = vld [vmem:[#allocation2 + $0x14] sm:$0xf]
    %v47 = vld [vmem:[#allocation2 + $0x18] sm:$0xf]
    %v48 = vld [vmem:[#allocation2 + $0x1c] sm:$0xf]
    %v49 = vld [vmem:[#allocation2 + $0x20] sm:$0xf]
    %v50 = vld [vmem:[#allocation2 + $0x24] sm:$0xf]
    %v51 = vld [vmem:[#allocation2 + $0x28] sm:$0xf]
    %v52 = vld [vmem:[#allocation2 + $0x2c] sm:$0xf]
    %v53 = vld [vmem:[#allocation2 + $0x30] sm:$0xf]
    %v54 = vld [vmem:[#allocation2 + $0x34] sm:$0xf]
    %v55 = vld [vmem:[#allocation2 + $0x38] sm:$0xf]
    %v56 = vld [vmem:[#allocation2 + $0x3c] sm:$0xf]
    %v57 = vld [vmem:[#allocation2 + $0x40] sm:$0xf]
    %v58 = vld [vmem:[#allocation2 + $0x44] sm:$0xf]
    %v59 = vld [vmem:[#allocation2 + $0x48] sm:$0xf]
    %v60 = vld [vmem:[#allocation2 + $0x4c] sm:$0xf]
    %v61 = vld [vmem:[#allocation2 + $0x50] sm:$0xf]
    %v62 = vld [vmem:[#allocation2 + $0x54] sm:$0xf]
    %v63 = vld [vmem:[#allocation2 + $0x58] sm:$0xf]
    %v64 = vld [vmem:[#allocation2 + $0x5c] sm:$0xf]
    %v65 = vld [vmem:[#allocation2 + $0x60] sm:$0xf]
    %v66 = vld [vmem:[#allocation2 + $0x64] sm:$0xf]
    %v67 = vld [vmem:[#allocation2 + $0x68] sm:$0xf]
    %v68 = vld [vmem:[#allocation2 + $0x6c] sm:$0xf]
    %v69 = vld [vmem:[#allocation2 + $0x70] sm:$0xf]
    %v70 = vld [vmem:[#allocation2 + $0x74] sm:$0xf]
    %v71 = vld [vmem:[#allocation2 + $0x78] sm:$0xf]
    %v72 = vld [vmem:[#allocation2 + $0x7c] sm:$0xf]
    %v73 = vld [vmem:[#allocation2 + $0x80] sm:$0xf]
    %v74 = vld [vmem:[#allocation2 + $0x84] sm:$0xf]
    %v75 = vld [vmem:[#allocation2 + $0x88] sm:$0xf]
    %v76 = vld [vmem:[#allocation2 + $0x8c] sm:$0xf]
    %v77 = vld [vmem:[#allocation2 + $0x90] sm:$0xf]
    %v78 = vld [vmem:[#allocation2 + $0x94] sm:$0xf]
    %v79 = vld [vmem:[#allocation2 + $0x98] sm:$0xf]
    %v80 = vld [vmem:[#allocation2 + $0x9c] sm:$0xf]
    %v81 = vld [vmem:[#allocation2 + $0xa0] sm:$0xf]
    %v82 = vld [vmem:[#allocation2 + $0xa4] sm:$0xf]
    %v83 = vld [vmem:[#allocation2 + $0xa8] sm:$0xf]
    %v84 = vld [vmem:[#allocation2 + $0xac] sm:$0xf]
    %v85 = vld [vmem:[#allocation2 + $0xb0] sm:$0xf]
    %v86 = vld [vmem:[#allocation2 + $0xb4] sm:$0xf]
    %v87 = vld [vmem:[#allocation2 + $0xb8] sm:$0xf]
    %v88 = vld [vmem:[#allocation2 + $0xbc] sm:$0xf]
    %v89 = vld [vmem:[#allocation2 + $0xc0] sm:$0xf]
    %v90 = vld [vmem:[#allocation2 + $0xc4] sm:$0xf]
    %v91 = vld [vmem:[#allocation2 + $0xc8] sm:$0xf]
    %v92 = vld [vmem:[#allocation2 + $0xcc] sm:$0xf]
    %v93 = vld [vmem:[#allocation2 + $0xd0] sm:$0xf]
    %v94 = vld [vmem:[#allocation2 + $0xd4] sm:$0xf]
    %v95 = vld [vmem:[#allocation2 + $0xd8] sm:$0xf]
    %v96 = vld [vmem:[#allocation2 + $0xdc] sm:$0xf]
    %v97 = vld [vmem:[#allocation2 + $0xe0] sm:$0xf]
    %v98 = vld [vmem:[#allocation2 + $0xe4] sm:$0xf]
    %v99 = vld [vmem:[#allocation2 + $0xe8] sm:$0xf]
    %v100 = vld [vmem:[#allocation2 + $0xec] sm:$0xf]
    %v101 = vld [vmem:[#allocation2 + $0xf0] sm:$0xf]
    %v102 = vld [vmem:[#allocation2 + $0xf4] sm:$0xf]
    %v103 = vld [vmem:[#allocation2 + $0xf8] sm:$0xf]
    %v104 = vld [vmem:[#allocation2 + $0xfc] sm:$0xf]
    %v105 = vld [vmem:[#allocation2 + $0x100] sm:$0xf]
    %v106 = vld [vmem:[#allocation2 + $0x104] sm:$0xf]
    %v107 = vld [vmem:[#allocation2 + $0x108] sm:$0xf]
    %v108 = vld [vmem:[#allocation2 + $0x10c] sm:$0xf]
    %v109 = vld [vmem:[#allocation2 + $0x110] sm:$0xf]
    %v110 = vld [vmem:[#allocation2 + $0x114] sm:$0xf]
    %v111 = vld [vmem:[#allocation2 + $0x118] sm:$0xf]
    %v112 = vld [vmem:[#allocation2 + $0x11c] sm:$0xf]
    %v113 = vld [vmem:[#allocation2 + $0x120] sm:$0xf]
    %v114 = vld [vmem:[#allocation2 + $0x124] sm:$0xf]
    %v115 = vld [vmem:[#allocation2 + $0x128] sm:$0xf]
    %v116 = vld [vmem:[#allocation2 + $0x12c] sm:$0xf]
    %v117 = vld [vmem:[#allocation2 + $0x130] sm:$0xf]
    %v118 = vld [vmem:[#allocation2 + $0x134] sm:$0xf]
    %v119 = vld [vmem:[#allocation2 + $0x138] sm:$0xf]
    %v120 = vld [vmem:[#allocation2 + $0x13c] sm:$0xf]
    %v121 = vld [vmem:[#allocation2 + $0x140] sm:$0xf]
    %v122 = vld [vmem:[#allocation2 + $0x144] sm:$0xf]
    %v123 = vld [vmem:[#allocation2 + $0x148] sm:$0xf]
    %v124 = vld [vmem:[#allocation2 + $0x14c] sm:$0xf]
    %v125 = vld [vmem:[#allocation2 + $0x150] sm:$0xf]
    %v126 = vld [vmem:[#allocation2 + $0x154] sm:$0xf]
    %v127 = vld [vmem:[#allocation2 + $0x158] sm:$0xf]
    %v128 = vld [vmem:[#allocation2 + $0x15c] sm:$0xf]
    %v129 = vld [vmem:[#allocation2 + $0x160] sm:$0xf]
    %v130 = vld [vmem:[#allocation2 + $0x164] sm:$0xf]
    %v131 = vld [vmem:[#allocation2 + $0x168] sm:$0xf]
    %v132 = vld [vmem:[#allocation2 + $0x16c] sm:$0xf]
    %v133 = vld [vmem:[#allocation2 + $0x170] sm:$0xf]
    %v134 = vld [vmem:[#allocation2 + $0x174] sm:$0xf]
    %v135 = vld [vmem:[#allocation2 + $0x178] sm:$0xf]
    %v136 = vld [vmem:[#allocation2 + $0x17c] sm:$0xf]
    %v137 = vld [vmem:[#allocation2 + $0x180] sm:$0xf]
    %v138 = vld [vmem:[#allocation2 + $0x184] sm:$0xf]
    %v139 = vld [vmem:[%s2] sm:$0x1]
    %v141 = vperm.slane %v139, 0
    %v147 = vunpack.c.l.b16 %v37
    %v148 = vunpack.c.h.b16 %v37
    %v149 = vunpack.c.l.b16 %v38
    %v150 = vunpack.c.h.b16 %v38
    %v151 = vunpack.c.l.b16 %v39
    %v152 = vunpack.c.h.b16 %v39
    %v153 = vunpack.c.l.b16 %v40
    %v154 = vpack.c.b16 %v147, %v147
    %v155 = vpack.c.b16 %v148, %v148
    %v156 = vpack.c.b16 %v149, %v149
    %v157 = vpack.c.b16 %v150, %v150
    %v158 = vpack.c.b16 %v151, %v151
    %v159 = vpack.c.b16 %v152, %v152
    %v160 = vpack.c.b16 %v153, %v153
    %v265 = vunpack.c.l.b16 %v41
    %v266 = vunpack.c.l.b16 %v42
    %v267 = vunpack.c.l.b16 %v43
    %v268 = vunpack.c.l.b16 %v44
    %v269 = vunpack.c.l.b16 %v45
    %v270 = vunpack.c.l.b16 %v46
    %v271 = vunpack.c.l.b16 %v47
    %v272 = vunpack.c.l.b16 %v48
    %v273 = vunpack.c.l.b16 %v49
    %v274 = vunpack.c.l.b16 %v50
    %v275 = vunpack.c.l.b16 %v51
    %v276 = vunpack.c.l.b16 %v52
    %v277 = vunpack.c.l.b16 %v53
    %v278 = vunpack.c.l.b16 %v54
    %v279 = vunpack.c.l.b16 %v55
    %v280 = vunpack.c.l.b16 %v56
    %v281 = vunpack.c.l.b16 %v57
    %v282 = vunpack.c.l.b16 %v58
    %v283 = vunpack.c.l.b16 %v59
    %v284 = vunpack.c.l.b16 %v60
    %v285 = vunpack.c.l.b16 %v61
    %v286 = vunpack.c.l.b16 %v62
    %v287 = vunpack.c.l.b16 %v63
    %v288 = vunpack.c.l.b16 %v64
    %v289 = vunpack.c.l.b16 %v65
    %v290 = vunpack.c.l.b16 %v66
    %v291 = vunpack.c.l.b16 %v67
    %v292 = vunpack.c.l.b16 %v68
    %v293 = vunpack.c.l.b16 %v69
    %v294 = vunpack.c.l.b16 %v70
    %v295 = vunpack.c.l.b16 %v71
    %v296 = vunpack.c.l.b16 %v72
    %v297 = vunpack.c.l.b16 %v73
    %v298 = vunpack.c.l.b16 %v74
    %v299 = vunpack.c.l.b16 %v75
    %v300 = vunpack.c.l.b16 %v76
    %v301 = vunpack.c.l.b16 %v77
    %v302 = vunpack.c.l.b16 %v78
    %v303 = vunpack.c.l.b16 %v79
    %v304 = vunpack.c.l.b16 %v80
    %v305 = vunpack.c.l.b16 %v81
    %v306 = vunpack.c.l.b16 %v82
    %v307 = vunpack.c.l.b16 %v83
    %v308 = vunpack.c.l.b16 %v84
    %v309 = vunpack.c.l.b16 %v85
    %v310 = vunpack.c.l.b16 %v86
    %v311 = vunpack.c.l.b16 %v87
    %v312 = vunpack.c.l.b16 %v88
    %v313 = vunpack.c.l.b16 %v89
    %v314 = vunpack.c.l.b16 %v90
    %v315 = vunpack.c.l.b16 %v91
    %v316 = vunpack.c.l.b16 %v92
    %v317 = vunpack.c.l.b16 %v93
    %v318 = vunpack.c.l.b16 %v94
    %v319 = vunpack.c.l.b16 %v95
    %v320 = vunpack.c.l.b16 %v96
    %v321 = vunpack.c.l.b16 %v97
    %v322 = vunpack.c.l.b16 %v98
    %v323 = vunpack.c.l.b16 %v99
    %v324 = vunpack.c.l.b16 %v100
    %v325 = vunpack.c.l.b16 %v101
    %v326 = vunpack.c.l.b16 %v102
    %v327 = vunpack.c.l.b16 %v103
    %v328 = vunpack.c.l.b16 %v104
    %v329 = vunpack.c.l.b16 %v105
    %v330 = vunpack.c.l.b16 %v106
    %v331 = vunpack.c.l.b16 %v107
    %v332 = vunpack.c.l.b16 %v108
    %v333 = vunpack.c.l.b16 %v109
    %v334 = vunpack.c.l.b16 %v110
    %v335 = vunpack.c.l.b16 %v111
    %v336 = vunpack.c.l.b16 %v112
    %v337 = vunpack.c.l.b16 %v113
    %v338 = vunpack.c.l.b16 %v114
    %v339 = vunpack.c.l.b16 %v115
    %v340 = vunpack.c.l.b16 %v116
    %v341 = vunpack.c.l.b16 %v117
    %v342 = vunpack.c.l.b16 %v118
    %v343 = vunpack.c.l.b16 %v119
    %v344 = vunpack.c.l.b16 %v120
    %v345 = vunpack.c.l.b16 %v121
    %v346 = vunpack.c.l.b16 %v122
    %v347 = vunpack.c.l.b16 %v123
    %v348 = vunpack.c.l.b16 %v124
    %v349 = vunpack.c.l.b16 %v125
    %v350 = vunpack.c.l.b16 %v126
    %v351 = vunpack.c.l.b16 %v127
    %v352 = vunpack.c.l.b16 %v128
    %v353 = vunpack.c.l.b16 %v129
    %v354 = vunpack.c.l.b16 %v130
    %v355 = vunpack.c.l.b16 %v131
    %v356 = vunpack.c.l.b16 %v132
    %v357 = vunpack.c.l.b16 %v133
    %v358 = vunpack.c.l.b16 %v134
    %v359 = vunpack.c.l.b16 %v135
    %v360 = vunpack.c.l.b16 %v136
    %v361 = vunpack.c.l.b16 %v137
    %v362 = vunpack.c.l.b16 %v138
    %v363 = vpack.c.b16 %v266, %v265
    %v364 = vpack.c.b16 %v268, %v267
    %v365 = vpack.c.b16 %v270, %v269
    %v366 = vpack.c.b16 %v272, %v271
    %v367 = vpack.c.b16 %v274, %v273
    %v368 = vpack.c.b16 %v276, %v275
    %v369 = vpack.c.b16 %v278, %v277
    %v370 = vpack.c.b16 %v280, %v279
    %v371 = vpack.c.b16 %v282, %v281
    %v372 = vpack.c.b16 %v284, %v283
    %v373 = vpack.c.b16 %v286, %v285
    %v374 = vpack.c.b16 %v288, %v287
    %v375 = vpack.c.b16 %v290, %v289
    %v376 = vpack.c.b16 %v292, %v291
    %v377 = vpack.c.b16 %v294, %v293
    %v378 = vpack.c.b16 %v296, %v295
    %v379 = vpack.c.b16 %v298, %v297
    %v380 = vpack.c.b16 %v300, %v299
    %v381 = vpack.c.b16 %v302, %v301
    %v382 = vpack.c.b16 %v304, %v303
    %v383 = vpack.c.b16 %v306, %v305
    %v384 = vpack.c.b16 %v308, %v307
    %v385 = vpack.c.b16 %v310, %v309
    %v386 = vpack.c.b16 %v312, %v311
    %v387 = vpack.c.b16 %v314, %v313
    %v388 = vpack.c.b16 %v316, %v315
    %v389 = vpack.c.b16 %v318, %v317
    %v390 = vpack.c.b16 %v320, %v319
    %v391 = vpack.c.b16 %v322, %v321
    %v392 = vpack.c.b16 %v324, %v323
    %v393 = vpack.c.b16 %v326, %v325
    %v394 = vpack.c.b16 %v328, %v327
    %v395 = vpack.c.b16 %v330, %v329
    %v396 = vpack.c.b16 %v332, %v331
    %v397 = vpack.c.b16 %v334, %v333
    %v398 = vpack.c.b16 %v336, %v335
    %v399 = vpack.c.b16 %v338, %v337
    %v400 = vpack.c.b16 %v340, %v339
    %v401 = vpack.c.b16 %v342, %v341
    %v402 = vpack.c.b16 %v344, %v343
    %v403 = vpack.c.b16 %v346, %v345
    %v404 = vpack.c.b16 %v348, %v347
    %v405 = vpack.c.b16 %v350, %v349
    %v406 = vpack.c.b16 %v352, %v351
    %v407 = vpack.c.b16 %v354, %v353
    %v408 = vpack.c.b16 %v356, %v355
    %v409 = vpack.c.b16 %v358, %v357
    %v410 = vpack.c.b16 %v360, %v359
    %v411 = vpack.c.b16 %v362, %v361
    %vm461 = vcmask 130048
    %v463 = vsel %vm461, %v160, 0
    %465 = vmatpush.bf16.msra.mxu0 %v370
    %466 = vmatpush.bf16.msra.mxu0 %v369
    %467 = vmatpush.bf16.msra.mxu0 %v368
    %468 = vmatpush.bf16.msra.mxu0 %v367
    %469 = vmatpush.bf16.msra.mxu0 %v366
    %470 = vmatpush.bf16.msra.mxu0 %v365
    %471 = vmatpush.bf16.msra.mxu0 %v364
    %472 = vmatpush.bf16.msra.mxu0 %v363
    %473 = vmatmul.bf16.gmra.mxu0 %v154
    %v474 = vpop.f32.mrf.mxu0
    %v475 = vadd.f32 %v141, %v474
    %v476 = vpop.f32.mrf.mxu0
    %477 = vdwg.mxu0
    %478 = vmatpush.bf16.msra.mxu0 %v378
    %479 = vmatpush.bf16.msra.mxu0 %v377
    %480 = vmatpush.bf16.msra.mxu0 %v376
    %481 = vmatpush.bf16.msra.mxu0 %v375
    %482 = vmatpush.bf16.msra.mxu0 %v374
    %483 = vmatpush.bf16.msra.mxu0 %v373
    %484 = vmatpush.bf16.msra.mxu0 %v372
    %485 = vmatpush.bf16.msra.mxu0 %v371
    %486 = vmatmul.bf16.gmra.mxu0 %v155
    %v487 = vpop.f32.mrf.mxu0
    %v488 = vadd.f32 %v475, %v487
    %v489 = vpop.f32.mrf.mxu0
    %490 = vdwg.mxu0
    %491 = vmatpush.bf16.msra.mxu0 %v386
    %492 = vmatpush.bf16.msra.mxu0 %v385
    %493 = vmatpush.bf16.msra.mxu0 %v384
    %494 = vmatpush.bf16.msra.mxu0 %v383
    %495 = vmatpush.bf16.msra.mxu0 %v382
    %496 = vmatpush.bf16.msra.mxu0 %v381
    %497 = vmatpush.bf16.msra.mxu0 %v380
    %498 = vmatpush.bf16.msra.mxu0 %v379
    %499 = vmatmul.bf16.gmra.mxu0 %v156
    %v500 = vpop.f32.mrf.mxu0
    %v501 = vadd.f32 %v488, %v500
    %v502 = vpop.f32.mrf.mxu0
    %503 = vdwg.mxu0
    %504 = vmatpush.bf16.msra.mxu0 %v394
    %505 = vmatpush.bf16.msra.mxu0 %v393
    %506 = vmatpush.bf16.msra.mxu0 %v392
    %507 = vmatpush.bf16.msra.mxu0 %v391
    %508 = vmatpush.bf16.msra.mxu0 %v390
    %509 = vmatpush.bf16.msra.mxu0 %v389
    %510 = vmatpush.bf16.msra.mxu0 %v388
    %511 = vmatpush.bf16.msra.mxu0 %v387
    %512 = vmatmul.bf16.gmra.mxu0 %v157
    %v513 = vpop.f32.mrf.mxu0
    %v514 = vadd.f32 %v501, %v513
    %v515 = vpop.f32.mrf.mxu0
    %516 = vdwg.mxu0
    %517 = vmatpush.bf16.msra.mxu0 %v402
    %518 = vmatpush.bf16.msra.mxu0 %v401
    %519 = vmatpush.bf16.msra.mxu0 %v400
    %520 = vmatpush.bf16.msra.mxu0 %v399
    %521 = vmatpush.bf16.msra.mxu0 %v398
    %522 = vmatpush.bf16.msra.mxu0 %v397
    %523 = vmatpush.bf16.msra.mxu0 %v396
    %524 = vmatpush.bf16.msra.mxu0 %v395
    %525 = vmatmul.bf16.gmra.mxu0 %v158
    %v526 = vpop.f32.mrf.mxu0
    %v527 = vadd.f32 %v514, %v526
    %v528 = vpop.f32.mrf.mxu0
    %529 = vdwg.mxu0
    %530 = vmatpush.bf16.msra.mxu0 %v410
    %531 = vmatpush.bf16.msra.mxu0 %v409
    %532 = vmatpush.bf16.msra.mxu0 %v408
    %533 = vmatpush.bf16.msra.mxu0 %v407
    %534 = vmatpush.bf16.msra.mxu0 %v406
    %535 = vmatpush.bf16.msra.mxu0 %v405
    %536 = vmatpush.bf16.msra.mxu0 %v404
    %537 = vmatpush.bf16.msra.mxu0 %v403
    %538 = vmatmul.bf16.gmra.mxu0 %v159
    %v539 = vpop.f32.mrf.mxu0
    %v540 = vadd.f32 %v527, %v539
    %v541 = vpop.f32.mrf.mxu0
    %542 = vdwg.mxu0
    %543 = vmatpush.bf16.msra.mxu0 0
    %544 = vmatpush.bf16.msra.mxu0 0
    %545 = vmatpush.bf16.msra.mxu0 0
    %546 = vmatpush.bf16.msra.mxu0 0
    %547 = vmatpush.bf16.msra.mxu0 0
    %548 = vmatpush.bf16.msra.mxu0 0
    %549 = vmatpush.bf16.msra.mxu0 0
    %550 = vmatpush.bf16.msra.mxu0 %v411
    %551 = vmatmul.bf16.gmra.mxu0 %v463
    %v552 = vpop.f32.mrf.mxu0
    %v553 = vadd.f32 %v540, %v552
    %v554 = vpop.f32.mrf.mxu0
    %555 = vdwg.mxu0
    %v556 = vmax.f32 %v553, 0.0
    %v557 = vld [vmem:[%s3] sm:$0xff]
    %v558 = vld [vmem:[%s3 + $0x8] sm:$0xff]
    %v559 = vld [vmem:[%s3 + $0x10] sm:$0xff]
    %v560 = vld [vmem:[%s3 + $0x18] sm:$0xff]
    %v561 = vld [vmem:[%s3 + $0x20] sm:$0xff]
    %v562 = vld [vmem:[%s3 + $0x28] sm:$0xff]
    %v563 = vld [vmem:[%s3 + $0x30] sm:$0xff]
    %v564 = vld [vmem:[%s3 + $0x38] sm:$0xff]
    %v565 = vld [vmem:[%s3 + $0x40] sm:$0xff]
    %v566 = vld [vmem:[%s3 + $0x48] sm:$0xff]
    %v567 = vld [vmem:[%s3 + $0x50] sm:$0xff]
    %v568 = vld [vmem:[%s3 + $0x58] sm:$0xff]
    %v569 = vld [vmem:[%s3 + $0x60] sm:$0xff]
    %v570 = vld [vmem:[%s3 + $0x68] sm:$0xff]
    %v571 = vld [vmem:[%s3 + $0x70] sm:$0xff]
    %v572 = vld [vmem:[%s3 + $0x78] sm:$0xff]
    %v573 = vld [vmem:[%s4] sm:$0x1]
    %v575 = vperm.slane %v573, 0
    %577 = vmatpush.msra.mxu0 %v572
    %578 = vmatpush.msra.mxu0 %v571
    %579 = vmatpush.msra.mxu0 %v570
    %580 = vmatpush.msra.mxu0 %v569
    %581 = vmatpush.msra.mxu0 %v568
    %582 = vmatpush.msra.mxu0 %v567
    %583 = vmatpush.msra.mxu0 %v566
    %584 = vmatpush.msra.mxu0 %v565
    %585 = vmatpush.msra.mxu0 %v564
    %586 = vmatpush.msra.mxu0 %v563
    %587 = vmatpush.msra.mxu0 %v562
    %588 = vmatpush.msra.mxu0 %v561
    %589 = vmatpush.msra.mxu0 %v560
    %590 = vmatpush.msra.mxu0 %v559
    %591 = vmatpush.msra.mxu0 %v558
    %592 = vmatpush.msra.mxu0 %v557
    %593 = vmatmul.f32.gmra.mxu0 %v556
    %v594 = vpop.f32.mrf.mxu0
    %v595 = vadd.f32 %v575, %v594
    %596 = vdwg.mxu0
    %v597 = vmax.f32 %v595, 0.0
    %598 = vst [vmem:[%s5] sm:$0xff] %v597
    // Predicated region
    $region26: #{resoptnet1_forward.2} parent=1 // pred_check
      _
    $region27: #{resoptnet1_forward.2} parent=1 // pred_check_branch
      %600 = sbr.rel (0) target = $region29
    $region28: #{resoptnet1_forward.2} parent=1 // pred_region
      _
    $region29: #{resoptnet1_forward.2} parent=1 // pred_fallthru
      _
    // Predicated region
    $region30: #{resoptnet1_forward.2} parent=1 // pred_check
      _
    $region31: #{resoptnet1_forward.2} parent=1 // pred_check_branch
      %602 = sbr.rel (0) target = $region33
    $region32: #{resoptnet1_forward.2} parent=1 // pred_region
      _
    $region33: #{resoptnet1_forward.2} parent=1 // pred_fallthru
      _
    %603 = vsyncpa [#allocation3], 1

// kernel: resoptnet1_forward.3
$region0: #{resoptnet1_forward.3}
  #allocation0 [shape = 'u32[]', space=smem, size = 0x4, offset = 0x4, fixed_abs, tag = 'smem constant byte address 0x4 - core index']
  #allocation1 [shape = 'u32[72,128]{1,0:T(1,128)}', space=vmem, size = 0x9000, scoped, tag = 'internal scratch']
  %s0 = inlined_call_operand.vmem [shape: f32[8,128], index: 0, kind: input, shape index: {}]
  %s1 = inlined_call_operand.vmem [shape: f32[8,128], index: 1, kind: input, shape index: {}]
  %s2 = inlined_call_operand.vmem [shape: f32[8,128], index: 2, kind: output, shape index: {}]
  %s3 = sld [smem:[#allocation0]]
  $region18: #{resoptnet1_forward.3} parent=0
    _
  %s5 = ssub.s32 1, %s3
  %s6 = scalar_select 0, %s5, %s3
  // Predicated region
  $region2: #{resoptnet1_forward.3} parent=0 // pred_check
    _
  $region3: #{resoptnet1_forward.3} parent=0 // pred_check_branch
    %8 = sbr.rel (0) target = $region5
  $region4: #{resoptnet1_forward.3} parent=0 // pred_region
    _
  $region5: #{resoptnet1_forward.3} parent=0 // pred_fallthru
    _
  // Predicated region
  $region6: #{resoptnet1_forward.3} parent=0 // pred_check
    _
  $region7: #{resoptnet1_forward.3} parent=0 // pred_check_branch
    %10 = sbr.rel (0) target = $region9
  $region8: #{resoptnet1_forward.3} parent=0 // pred_region
    _
  $region9: #{resoptnet1_forward.3} parent=0 // pred_fallthru
    _
  %v11 = vld [vmem:[%s0] sm:$0xff]
  %v12 = vld [vmem:[%s1] sm:$0xff]
  %v13 = vadd.f32 %v11, %v12
  %v14 = vlaneseq
  %v15 = vand.u32 %v14, 127
  %vm16 = vcmp.lt.s32.totalorder %v15, 10
  %v17 = vsel %vm16, %v13, -inf
  %18 = vmax.xlane.f32.xlu0 %v17
  %v19 = vpop.xlane.xlu0 %18
  %v20 = vsub.f32 %v17, %v19
  %v21 = vmul.f32 %v20, 1.442695
  %v22 = vpow.pop %v21
  %23 = vadd.xlane.f32.xlu0 %v22
  %v24 = vpop.xlane.xlu0 %23
  %v25 = vlog2.pop %v24
  %v26 = vmul.f32 %v25, 0.6931472
  %v27 = vadd.f32 %v19, %v26
  %v28 = vsub.f32 %v17, %v27
  %29 = vst [vmem:[%s2] sm:$0xff] %v28
  // Predicated region
  $region10: #{resoptnet1_forward.3} parent=0 // pred_check
    _
  $region11: #{resoptnet1_forward.3} parent=0 // pred_check_branch
    %31 = sbr.rel (0) target = $region13
  $region12: #{resoptnet1_forward.3} parent=0 // pred_region
    _
  $region13: #{resoptnet1_forward.3} parent=0 // pred_fallthru
    _
  // Predicated region
  $region14: #{resoptnet1_forward.3} parent=0 // pred_check
    _
  $region15: #{resoptnet1_forward.3} parent=0 // pred_check_branch
    %33 = sbr.rel (0) target = $region17
  $region16: #{resoptnet1_forward.3} parent=0 // pred_region
    _
  $region17: #{resoptnet1_forward.3} parent=0 // pred_fallthru
    _

</llo_original>
